<compile_context>
chip_gen: v5e
topology: v5e:2x2
jax: 0.10.0
libtpu: 0.0.40
codegen_flags: <defaults>
</compile_context>

<pallas_src>
import functools

import jax
import jax.numpy as jnp
from jax.experimental import pallas as pl
from jax.experimental.pallas import tpu as pltpu

LRELU_SLOPE = 0.2
BN_EPS = 1e-5
TM_MAX = 2048                      # max lane tile over M = N*Ho*Wo
COMPUTE_DTYPE = jnp.bfloat16       # MXU input dtype; accumulation stays f32


def _round_up(x, m):
    return ((x + m - 1) // m) * m


def _vmem_limit_bytes():
    """Generation-aware scoped-VMEM request (v7x has only 64 MiB physical)."""
    try:
        kind = jax.devices()[0].device_kind.lower()
    except Exception:
        kind = ""
    if "v7" in kind:
        return 32 * 1024 * 1024
    return 64 * 1024 * 1024


def _pick_tm(m, k_dim, cout, vmem_limit):
    """Largest lane tile (multiple of 128) whose pipelined buffers fit the budget."""
    def vmem_bytes(t):
        patch = 2 * k_dim * t * 2            # double-buffered bf16 patch tile
        out = 2 * cout * t * 4               # double-buffered f32 output tile
        resident = 2 * cout * k_dim * 2 + 4 * cout * 4
        return patch + out + resident + (128 << 10)

    tm = min(TM_MAX, _round_up(m, 128))
    while tm > 128 and vmem_bytes(tm) > vmem_limit // 2:
        tm -= 128
    return tm


# ----------------------------------------------------------------------------
# Pallas kernels
# ----------------------------------------------------------------------------
def conv_bn_lrelu_kernel(*refs, m_valid, apply_lrelu, has_bn):
    """Whole-M tile: y (Cout, TM) = W (Cout, K) @ P (K, TM) + bias [+ BN] [+ LReLU].

    Used when M fits in one lane tile: BatchNorm batch statistics are computed
    in-tile with exact centered variance, so no cross-tile reduction and no
    extra HBM round trip is needed.  Padded-M tail lanes are masked out of the
    statistics.
    """
    if has_bn:
        p_ref, w_ref, b_ref, g_ref, bt_ref, y_ref = refs
    else:
        p_ref, w_ref, b_ref, y_ref = refs

    acc = jnp.dot(w_ref[...], p_ref[...],
                  preferred_element_type=jnp.float32)          # (Cout, TM) f32
    acc = acc + b_ref[...]                                     # (Cout, 1) bcast

    if has_bn:
        lane = jax.lax.broadcasted_iota(jnp.int32, acc.shape, 1)
        valid = lane < m_valid
        inv_m = 1.0 / m_valid
        mean = jnp.sum(jnp.where(valid, acc, 0.0), axis=1, keepdims=True) * inv_m
        d = jnp.where(valid, acc - mean, 0.0)
        var = jnp.sum(d * d, axis=1, keepdims=True) * inv_m    # biased, as torch
        scale = g_ref[...] * jax.lax.rsqrt(var + BN_EPS)
        acc = (acc - mean) * scale + bt_ref[...]

    if apply_lrelu:
        acc = jnp.where(acc >= 0, acc, LRELU_SLOPE * acc)
    y_ref[...] = acc


def conv_tiled_kernel(*refs, tm, m_valid, apply_lrelu, collect_stats):
    """M-tiled conv tile + optional PER-TILE partial BN statistics.

    Partial sums go to distinct grid columns (no resident accumulator and no
    cross-tile reduction), so the M axis keeps "parallel" semantics and both
    v7x TensorCores can work on it.
    """
    if collect_stats:
        p_ref, w_ref, b_ref, y_ref, sum_ref, sq_ref = refs
    else:
        p_ref, w_ref, b_ref, y_ref = refs

    i = pl.program_id(0)
    acc = jnp.dot(w_ref[...], p_ref[...], preferred_element_type=jnp.float32)
    acc = acc + b_ref[...]

    if collect_stats:
        lane = jax.lax.broadcasted_iota(jnp.int32, acc.shape, 1)
        valid = (i * tm + lane) < m_valid
        yv = jnp.where(valid, acc, 0.0)
        sum_ref[0] = jnp.sum(yv, axis=1, keepdims=True)        # (Cout, 1)
        sq_ref[0] = jnp.sum(yv * yv, axis=1, keepdims=True)

    if apply_lrelu:
        acc = jnp.where(acc >= 0, acc, LRELU_SLOPE * acc)
    y_ref[...] = acc


def bn_apply_kernel(y_ref, scale_ref, shift_ref, o_ref):
    """Elementwise y*scale + shift + LeakyReLU; scale/shift precomputed once."""
    y = y_ref[...] * scale_ref[...] + shift_ref[...]
    o_ref[...] = jnp.where(y >= 0, y, LRELU_SLOPE * y)


# ----------------------------------------------------------------------------
# Layer wrapper (glue: patch extraction stays in XLA -- see TODO(synk) above)
# ----------------------------------------------------------------------------
def _im2col_cm(a_cm, k, stride, pad, m_pad):
    """Channel-major activation (C, N, H, W) -> bf16 patches (K, M_pad).

    K ordered (kh, kw, cin); M ordered (n, oh, ow); tail [M, M_pad) zero-padded.
    """
    c, n, h, w = a_cm.shape
    ap = jnp.pad(a_cm, ((0, 0), (0, 0), (pad, pad), (pad, pad)))
    ho = (h + 2 * pad - k) // stride + 1
    wo = (w + 2 * pad - k) // stride + 1
    taps = [ap[:, :, kh:kh + stride * ho:stride, kw:kw + stride * wo:stride]
            for kh in range(k) for kw in range(k)]
    p = jnp.stack(taps, axis=0).reshape(k * k * c, n * ho * wo)
    m = n * ho * wo
    if m_pad > m:
        p = jnp.pad(p, ((0, 0), (0, m_pad - m)))
    return p.astype(COMPUTE_DTYPE), ho, wo


def conv_bn_lrelu_layer(a_cm, p, *, stride, lrelu, bn, vmem_limit):
    """One discriminator layer on a channel-major activation (Cin, N, H, W).

    Returns the next channel-major activation (Cout, N, Ho, Wo).
    """
    weight = p["w"]
    cout, cin, kh, kw = weight.shape
    _, n, h, w = a_cm.shape
    pad = 1
    ho = (h + 2 * pad - kh) // stride + 1
    wo = (w + 2 * pad - kw) // stride + 1
    m = n * ho * wo
    k_dim = kh * kw * cin

    tm = _pick_tm(m, k_dim, cout, vmem_limit)
    num_m = -(-m // tm)
    m_pad = num_m * tm

    patches, _, _ = _im2col_cm(a_cm, kh, stride, pad, m_pad)
    wt = jnp.transpose(weight, (0, 2, 3, 1)).reshape(cout, k_dim)
    wt = wt.astype(COMPUTE_DTYPE)
    b = p["b"] if p["b"] is not None else jnp.zeros((cout,), jnp.float32)
    b = b.reshape(cout, 1).astype(jnp.float32)

    cparams = pltpu.CompilerParams(
        dimension_semantics=("parallel",), vmem_limit_bytes=vmem_limit)

    small_spec = pl.BlockSpec((cout, 1), lambda i: (0, 0))
    w_spec = pl.BlockSpec((cout, k_dim), lambda i: (0, 0))
    p_spec = pl.BlockSpec((k_dim, tm), lambda i: (0, i))
    y_spec = pl.BlockSpec((cout, tm), lambda i: (0, i))
    y_shape = jax.ShapeDtypeStruct((cout, m_pad), jnp.float32)

    if num_m == 1:
        # Fully fused conv (+ BN + LeakyReLU) in one grid step, whole M resident.
        kern = functools.partial(conv_bn_lrelu_kernel, m_valid=m,
                                 apply_lrelu=lrelu, has_bn=bn)
        in_specs = [p_spec, w_spec, small_spec]
        args = [patches, wt, b]
        if bn:
            in_specs += [small_spec, small_spec]
            args += [p["gamma"].reshape(cout, 1).astype(jnp.float32),
                     p["beta"].reshape(cout, 1).astype(jnp.float32)]
        y = pl.pallas_call(
            kern, grid=(1,), in_specs=in_specs,
            out_specs=y_spec, out_shape=y_shape,
            compiler_params=cparams,
        )(*args)
    else:
        # Fallback for large M: per-tile partial stats ("parallel" M axis), then
        # one in-place normalize + LeakyReLU pass with precomputed scale/shift.
        kern = functools.partial(conv_tiled_kernel, tm=tm, m_valid=m,
                                 apply_lrelu=(lrelu and not bn),
                                 collect_stats=bn)
        in_specs = [p_spec, w_spec, small_spec]
        if bn:
            stat_spec = pl.BlockSpec((1, cout, 1), lambda i: (i, 0, 0))
            stat_shape = jax.ShapeDtypeStruct((num_m, cout, 1), jnp.float32)
            y, psum, psq = pl.pallas_call(
                kern, grid=(num_m,), in_specs=in_specs,
                out_specs=(y_spec, stat_spec, stat_spec),
                out_shape=(y_shape, stat_shape, stat_shape),
                compiler_params=cparams,
            )(patches, wt, b)
            s_sum = jnp.sum(psum, axis=0)                       # (cout, 1)
            s_sq = jnp.sum(psq, axis=0)
            # TODO(synk): sum/sumsq variance can cancel for large-mean channels;
            # the fused single-tile path above already uses centered variance.
            mean = s_sum / m
            var = jnp.maximum(s_sq / m - mean * mean, 0.0)
            scale = p["gamma"].reshape(cout, 1) * jax.lax.rsqrt(var + BN_EPS)
            shift = p["beta"].reshape(cout, 1) - mean * scale
            y = pl.pallas_call(
                bn_apply_kernel, grid=(num_m,),
                in_specs=[y_spec, small_spec, small_spec],
                out_specs=y_spec, out_shape=y_shape,
                input_output_aliases={0: 0},
                compiler_params=cparams,
            )(y, scale.astype(jnp.float32), shift.astype(jnp.float32))
        else:
            y = pl.pallas_call(
                kern, grid=(num_m,), in_specs=in_specs,
                out_specs=y_spec, out_shape=y_shape,
                compiler_params=cparams,
            )(patches, wt, b)

    # (Cout, M_pad) -> drop padded tail -> channel-major activation for next layer
    return y[:, :m].reshape(cout, n, ho, wo)


# ----------------------------------------------------------------------------
# NLayerDiscriminator: param init + forward
# ----------------------------------------------------------------------------
def build_discriminator(key, input_nc=3, ndf=8, n_layers=3):
    """Returns (configs, params).

    configs: static per-layer structure (Python ints/bools; closed over, never traced).
    params:  arrays only (jit-traceable pytree).
    """
    kw = 4
    configs, params = [], []

    def conv_p(k, cin, cout, use_bias):
        k_w, k_b = jax.random.split(k)
        return {"w": 0.02 * jax.random.normal(k_w, (cout, cin, kw, kw), jnp.float32),
                "b": (0.02 * jax.random.normal(k_b, (cout,), jnp.float32)
                      if use_bias else None)}

    def bn_p(k, c):
        k_g, k_b = jax.random.split(k)
        return {"gamma": 1.0 + 0.1 * jax.random.normal(k_g, (c,), jnp.float32),
                "beta": 0.1 * jax.random.normal(k_b, (c,), jnp.float32)}

    keys = jax.random.split(key, 2 * (n_layers + 2))
    ki = 0

    # layer 0: Conv(input_nc -> ndf, s2, bias) + LeakyReLU (no norm)
    configs.append({"stride": 2, "lrelu": True, "bn": False})
    params.append(conv_p(keys[ki], input_nc, ndf, True)); ki += 1

    nf_mult = 1
    for layer_n in range(1, n_layers):
        nf_prev, nf_mult = nf_mult, min(2 ** layer_n, 8)
        configs.append({"stride": 2, "lrelu": True, "bn": True})
        p = conv_p(keys[ki], ndf * nf_prev, ndf * nf_mult, False)   # BN => no bias
        p.update(bn_p(keys[ki + 1], ndf * nf_mult))
        params.append(p); ki += 2

    nf_prev, nf_mult = nf_mult, min(2 ** n_layers, 8)
    configs.append({"stride": 1, "lrelu": True, "bn": True})
    p = conv_p(keys[ki], ndf * nf_prev, ndf * nf_mult, False)
    p.update(bn_p(keys[ki + 1], ndf * nf_mult))
    params.append(p); ki += 2

    # final: Conv(ndf*nf_mult -> 1, s1, bias), no norm / no activation
    configs.append({"stride": 1, "lrelu": False, "bn": False})
    params.append(conv_p(keys[ki], ndf * nf_mult, 1, True)); ki += 1

    return tuple(configs), params


def make_forward(configs):
    """Build the forward fn; `configs` is static and closed over."""
    vmem_limit = _vmem_limit_bytes()

    def forward(params, x_nchw):
        # NCHW -> channel-major (C, N, H, W); stays channel-major between layers.
        a = jnp.transpose(x_nchw, (1, 0, 2, 3)).astype(jnp.float32)
        for cfg, p in zip(configs, params):
            a = conv_bn_lrelu_layer(a, p, stride=cfg["stride"],
                                    lrelu=cfg["lrelu"], bn=cfg["bn"],
                                    vmem_limit=vmem_limit)
        return jnp.transpose(a, (1, 0, 2, 3))                  # -> (N, 1, Ho, Wo)

    return forward


if __name__ == "__main__":
    key = jax.random.PRNGKey(0)
    k_param, k_in = jax.random.split(key)

    input_nc, ndf, n_layers = 3, 8, 3
    configs, params = build_discriminator(k_param, input_nc=input_nc,
                                          ndf=ndf, n_layers=n_layers)

    # spatial=32 is the smallest power-of-two size valid for a 3-layer PatchGAN
    x = jax.random.normal(k_in, (2, input_nc, 32, 32), jnp.float32)

    forward = jax.jit(make_forward(configs))
    out = jax.block_until_ready(forward(params, x))

    assert out.shape == (2, 1, 2, 2), out.shape
    assert bool(jnp.all(jnp.isfinite(out)))
    print("KERNEL_OK")
</pallas_src>

<mosaic_0001>
module attributes {stable_mosaic.version = 11 : i64} {
  func.func @conv_bn_lrelu_kernel(%arg0: i32, %arg1: memref<48x512xbf16, #tpu.memory_space<vmem>>, %arg2: memref<8x48xbf16, #tpu.memory_space<vmem>>, %arg3: memref<8x1xf32, #tpu.memory_space<vmem>>, %arg4: memref<8x512xf32, #tpu.memory_space<vmem>>) attributes {dimension_semantics = [#tpu.dimension_semantics<parallel>], iteration_bounds = array<i64: 1>, scalar_prefetch = 0 : i64, scratch_operands = 0 : i64, tpu.core_type = #tpu.core_type<tc>, window_params = [{transform_indices = @transform_0, window_bounds = array<i64: 48, 512>}, {pipeline_mode = #tpu.pipeline_mode<synchronous>, transform_indices = @transform_1, window_bounds = array<i64: 8, 48>}, {pipeline_mode = #tpu.pipeline_mode<synchronous>, transform_indices = @transform_2, window_bounds = array<i64: 8, 1>}, {transform_indices = @transform_3, window_bounds = array<i64: 8, 512>}]} {
    %c0 = arith.constant 0 : index
    %c0_0 = arith.constant 0 : index
    %0 = vector.load %arg2[%c0, %c0_0] : memref<8x48xbf16, #tpu.memory_space<vmem>>, vector<8x48xbf16>
    %c0_1 = arith.constant 0 : index
    %c0_2 = arith.constant 0 : index
    %1 = vector.load %arg1[%c0_1, %c0_2] : memref<48x512xbf16, #tpu.memory_space<vmem>>, vector<48x512xbf16>
    %cst = arith.constant dense<0.000000e+00> : vector<8x512xf32>
    %2 = tpu.matmul %0, %1, %cst {dimension_numbers = #tpu.dot_dimension_numbers<[1], [0], [0], [1], [0, 0, 1, 1], [], []>} : vector<8x48xbf16>, vector<48x512xbf16>, vector<8x512xf32> -> vector<8x512xf32>
    %c0_3 = arith.constant 0 : index
    %c0_4 = arith.constant 0 : index
    %3 = vector.load %arg3[%c0_3, %c0_4] : memref<8x1xf32, #tpu.memory_space<vmem>>, vector<8x1xf32>
    %4 = vector.broadcast %3 : vector<8x1xf32> to vector<8x512xf32>
    %5 = arith.addf %2, %4 : vector<8x512xf32>
    %cst_5 = arith.constant 0.000000e+00 : f32
    %6 = vector.broadcast %cst_5 : f32 to vector<8x512xf32>
    %7 = arith.cmpf oge, %5, %6 : vector<8x512xf32>
    %cst_6 = arith.constant 2.000000e-01 : f32
    %8 = vector.broadcast %cst_6 : f32 to vector<8x512xf32>
    %9 = arith.mulf %8, %5 : vector<8x512xf32>
    %10 = arith.select %7, %5, %9 : vector<8x512xi1>, vector<8x512xf32>
    %c0_7 = arith.constant 0 : index
    %c0_8 = arith.constant 0 : index
    %11 = vector.load %arg4[%c0_7, %c0_8] : memref<8x512xf32, #tpu.memory_space<vmem>>, vector<8x512xf32>
    tpu.vector_store %arg4[%c0_7, %c0_8], %10 {strides = array<i32>} : memref<8x512xf32, #tpu.memory_space<vmem>>, vector<8x512xf32>,
    return
  }
  func.func @transform_0(%arg0: i32) -> (i32, i32) {
    %c0_i32 = arith.constant 0 : i32
    %c0_i32_0 = arith.constant 0 : i32
    return %c0_i32, %arg0 : i32, i32
  }
  func.func @transform_1(%arg0: i32) -> (i32, i32) {
    %c0_i32 = arith.constant 0 : i32
    %c0_i32_0 = arith.constant 0 : i32
    %c0_i32_1 = arith.constant 0 : i32
    return %c0_i32, %c0_i32_0 : i32, i32
  }
  func.func @transform_2(%arg0: i32) -> (i32, i32) {
    %c0_i32 = arith.constant 0 : i32
    %c0_i32_0 = arith.constant 0 : i32
    %c0_i32_1 = arith.constant 0 : i32
    return %c0_i32, %c0_i32_0 : i32, i32
  }
  func.func @transform_3(%arg0: i32) -> (i32, i32) {
    %c0_i32 = arith.constant 0 : i32
    %c0_i32_0 = arith.constant 0 : i32
    return %c0_i32, %arg0 : i32, i32
  }
}

module attributes {stable_mosaic.version = 11 : i64} {
  func.func @conv_bn_lrelu_kernel(%arg0: i32, %arg1: memref<128x128xbf16, #tpu.memory_space<vmem>>, %arg2: memref<16x128xbf16, #tpu.memory_space<vmem>>, %arg3: memref<16x1xf32, #tpu.memory_space<vmem>>, %arg4: memref<16x1xf32, #tpu.memory_space<vmem>>, %arg5: memref<16x1xf32, #tpu.memory_space<vmem>>, %arg6: memref<16x128xf32, #tpu.memory_space<vmem>>) attributes {dimension_semantics = [#tpu.dimension_semantics<parallel>], iteration_bounds = array<i64: 1>, scalar_prefetch = 0 : i64, scratch_operands = 0 : i64, tpu.core_type = #tpu.core_type<tc>, window_params = [{transform_indices = @transform_0, window_bounds = array<i64: 128, 128>}, {pipeline_mode = #tpu.pipeline_mode<synchronous>, transform_indices = @transform_1, window_bounds = array<i64: 16, 128>}, {pipeline_mode = #tpu.pipeline_mode<synchronous>, transform_indices = @transform_2, window_bounds = array<i64: 16, 1>}, {pipeline_mode = #tpu.pipeline_mode<synchronous>, transform_indices = @transform_3, window_bounds = array<i64: 16, 1>}, {pipeline_mode = #tpu.pipeline_mode<synchronous>, transform_indices = @transform_4, window_bounds = array<i64: 16, 1>}, {transform_indices = @transform_5, window_bounds = array<i64: 16, 128>}]} {
    %c0 = arith.constant 0 : index
    %c0_0 = arith.constant 0 : index
    %0 = vector.load %arg2[%c0, %c0_0] : memref<16x128xbf16, #tpu.memory_space<vmem>>, vector<16x128xbf16>
    %c0_1 = arith.constant 0 : index
    %c0_2 = arith.constant 0 : index
    %1 = vector.load %arg1[%c0_1, %c0_2] : memref<128x128xbf16, #tpu.memory_space<vmem>>, vector<128x128xbf16>
    %cst = arith.constant dense<0.000000e+00> : vector<16x128xf32>
    %2 = tpu.matmul %0, %1, %cst {dimension_numbers = #tpu.dot_dimension_numbers<[1], [0], [0], [1], [0, 0, 1, 1], [], []>} : vector<16x128xbf16>, vector<128x128xbf16>, vector<16x128xf32> -> vector<16x128xf32>
    %c0_3 = arith.constant 0 : index
    %c0_4 = arith.constant 0 : index
    %3 = vector.load %arg3[%c0_3, %c0_4] : memref<16x1xf32, #tpu.memory_space<vmem>>, vector<16x1xf32>
    %4 = vector.broadcast %3 : vector<16x1xf32> to vector<16x128xf32>
    %5 = arith.addf %2, %4 : vector<16x128xf32>
    %6 = tpu.iota {dimensions = array<i32: 1>} : vector<16x128xi32>
    %c128_i32 = arith.constant 128 : i32
    %7 = vector.broadcast %c128_i32 : i32 to vector<16x128xi32>
    %8 = arith.cmpi slt, %6, %7 : vector<16x128xi32>
    %cst_5 = arith.constant 0.000000e+00 : f32
    %9 = vector.broadcast %cst_5 : f32 to vector<16x128xf32>
    %10 = arith.select %8, %5, %9 : vector<16x128xi1>, vector<16x128xf32>
    %cst_6 = arith.constant dense<0.000000e+00> : vector<16xf32>
    %11 = vector.multi_reduction <add>, %10, %cst_6 [1] : vector<16x128xf32> to vector<16xf32>
    %12 = vector.shape_cast %11 : vector<16xf32> to vector<16x1xf32>
    %cst_7 = arith.constant 7.812500e-03 : f32
    %13 = vector.broadcast %cst_7 : f32 to vector<16x1xf32>
    %14 = arith.mulf %12, %13 : vector<16x1xf32>
    %15 = vector.broadcast %14 : vector<16x1xf32> to vector<16x128xf32>
    %16 = arith.subf %5, %15 : vector<16x128xf32>
    %cst_8 = arith.constant 0.000000e+00 : f32
    %17 = vector.broadcast %cst_8 : f32 to vector<16x128xf32>
    %18 = arith.select %8, %16, %17 : vector<16x128xi1>, vector<16x128xf32>
    %19 = arith.mulf %18, %18 : vector<16x128xf32>
    %cst_9 = arith.constant dense<0.000000e+00> : vector<16xf32>
    %20 = vector.multi_reduction <add>, %19, %cst_9 [1] : vector<16x128xf32> to vector<16xf32>
    %21 = vector.shape_cast %20 : vector<16xf32> to vector<16x1xf32>
    %cst_10 = arith.constant 7.812500e-03 : f32
    %22 = vector.broadcast %cst_10 : f32 to vector<16x1xf32>
    %23 = arith.mulf %21, %22 : vector<16x1xf32>
    %c0_11 = arith.constant 0 : index
    %c0_12 = arith.constant 0 : index
    %24 = vector.load %arg4[%c0_11, %c0_12] : memref<16x1xf32, #tpu.memory_space<vmem>>, vector<16x1xf32>
    %cst_13 = arith.constant 9.99999974E-6 : f32
    %25 = vector.broadcast %cst_13 : f32 to vector<16x1xf32>
    %26 = arith.addf %23, %25 : vector<16x1xf32>
    %27 = math.rsqrt %26 : vector<16x1xf32>
    %28 = arith.mulf %24, %27 : vector<16x1xf32>
    %29 = vector.broadcast %14 : vector<16x1xf32> to vector<16x128xf32>
    %30 = arith.subf %5, %29 : vector<16x128xf32>
    %31 = vector.broadcast %28 : vector<16x1xf32> to vector<16x128xf32>
    %32 = arith.mulf %30, %31 : vector<16x128xf32>
    %c0_14 = arith.constant 0 : index
    %c0_15 = arith.constant 0 : index
    %33 = vector.load %arg5[%c0_14, %c0_15] : memref<16x1xf32, #tpu.memory_space<vmem>>, vector<16x1xf32>
    %34 = vector.broadcast %33 : vector<16x1xf32> to vector<16x128xf32>
    %35 = arith.addf %32, %34 : vector<16x128xf32>
    %cst_16 = arith.constant 0.000000e+00 : f32
    %36 = vector.broadcast %cst_16 : f32 to vector<16x128xf32>
    %37 = arith.cmpf oge, %35, %36 : vector<16x128xf32>
    %cst_17 = arith.constant 2.000000e-01 : f32
    %38 = vector.broadcast %cst_17 : f32 to vector<16x128xf32>
    %39 = arith.mulf %38, %35 : vector<16x128xf32>
    %40 = arith.select %37, %35, %39 : vector<16x128xi1>, vector<16x128xf32>
    %c0_18 = arith.constant 0 : index
    %c0_19 = arith.constant 0 : index
    %41 = vector.load %arg6[%c0_18, %c0_19] : memref<16x128xf32, #tpu.memory_space<vmem>>, vector<16x128xf32>
    tpu.vector_store %arg6[%c0_18, %c0_19], %40 {strides = array<i32>} : memref<16x128xf32, #tpu.memory_space<vmem>>, vector<16x128xf32>,
    return
  }
  func.func @transform_0(%arg0: i32) -> (i32, i32) {
    %c0_i32 = arith.constant 0 : i32
    %c0_i32_0 = arith.constant 0 : i32
    return %c0_i32, %arg0 : i32, i32
  }
  func.func @transform_1(%arg0: i32) -> (i32, i32) {
    %c0_i32 = arith.constant 0 : i32
    %c0_i32_0 = arith.constant 0 : i32
    %c0_i32_1 = arith.constant 0 : i32
    return %c0_i32, %c0_i32_0 : i32, i32
  }
  func.func @transform_2(%arg0: i32) -> (i32, i32) {
    %c0_i32 = arith.constant 0 : i32
    %c0_i32_0 = arith.constant 0 : i32
    %c0_i32_1 = arith.constant 0 : i32
    return %c0_i32, %c0_i32_0 : i32, i32
  }
  func.func @transform_3(%arg0: i32) -> (i32, i32) {
    %c0_i32 = arith.constant 0 : i32
    %c0_i32_0 = arith.constant 0 : i32
    %c0_i32_1 = arith.constant 0 : i32
    return %c0_i32, %c0_i32_0 : i32, i32
  }
  func.func @transform_4(%arg0: i32) -> (i32, i32) {
    %c0_i32 = arith.constant 0 : i32
    %c0_i32_0 = arith.constant 0 : i32
    %c0_i32_1 = arith.constant 0 : i32
    return %c0_i32, %c0_i32_0 : i32, i32
  }
  func.func @transform_5(%arg0: i32) -> (i32, i32) {
    %c0_i32 = arith.constant 0 : i32
    %c0_i32_0 = arith.constant 0 : i32
    return %c0_i32, %arg0 : i32, i32
  }
}

module attributes {stable_mosaic.version = 11 : i64} {
  func.func @conv_bn_lrelu_kernel(%arg0: i32, %arg1: memref<256x128xbf16, #tpu.memory_space<vmem>>, %arg2: memref<32x256xbf16, #tpu.memory_space<vmem>>, %arg3: memref<32x1xf32, #tpu.memory_space<vmem>>, %arg4: memref<32x1xf32, #tpu.memory_space<vmem>>, %arg5: memref<32x1xf32, #tpu.memory_space<vmem>>, %arg6: memref<32x128xf32, #tpu.memory_space<vmem>>) attributes {dimension_semantics = [#tpu.dimension_semantics<parallel>], iteration_bounds = array<i64: 1>, scalar_prefetch = 0 : i64, scratch_operands = 0 : i64, tpu.core_type = #tpu.core_type<tc>, window_params = [{transform_indices = @transform_0, window_bounds = array<i64: 256, 128>}, {pipeline_mode = #tpu.pipeline_mode<synchronous>, transform_indices = @transform_1, window_bounds = array<i64: 32, 256>}, {pipeline_mode = #tpu.pipeline_mode<synchronous>, transform_indices = @transform_2, window_bounds = array<i64: 32, 1>}, {pipeline_mode = #tpu.pipeline_mode<synchronous>, transform_indices = @transform_3, window_bounds = array<i64: 32, 1>}, {pipeline_mode = #tpu.pipeline_mode<synchronous>, transform_indices = @transform_4, window_bounds = array<i64: 32, 1>}, {transform_indices = @transform_5, window_bounds = array<i64: 32, 128>}]} {
    %c0 = arith.constant 0 : index
    %c0_0 = arith.constant 0 : index
    %0 = vector.load %arg2[%c0, %c0_0] : memref<32x256xbf16, #tpu.memory_space<vmem>>, vector<32x256xbf16>
    %c0_1 = arith.constant 0 : index
    %c0_2 = arith.constant 0 : index
    %1 = vector.load %arg1[%c0_1, %c0_2] : memref<256x128xbf16, #tpu.memory_space<vmem>>, vector<256x128xbf16>
    %cst = arith.constant dense<0.000000e+00> : vector<32x128xf32>
    %2 = tpu.matmul %0, %1, %cst {dimension_numbers = #tpu.dot_dimension_numbers<[1], [0], [0], [1], [0, 0, 1, 1], [], []>} : vector<32x256xbf16>, vector<256x128xbf16>, vector<32x128xf32> -> vector<32x128xf32>
    %c0_3 = arith.constant 0 : index
    %c0_4 = arith.constant 0 : index
    %3 = vector.load %arg3[%c0_3, %c0_4] : memref<32x1xf32, #tpu.memory_space<vmem>>, vector<32x1xf32>
    %4 = vector.broadcast %3 : vector<32x1xf32> to vector<32x128xf32>
    %5 = arith.addf %2, %4 : vector<32x128xf32>
    %6 = tpu.iota {dimensions = array<i32: 1>} : vector<32x128xi32>
    %c32_i32 = arith.constant 32 : i32
    %7 = vector.broadcast %c32_i32 : i32 to vector<32x128xi32>
    %8 = arith.cmpi slt, %6, %7 : vector<32x128xi32>
    %cst_5 = arith.constant 0.000000e+00 : f32
    %9 = vector.broadcast %cst_5 : f32 to vector<32x128xf32>
    %10 = arith.select %8, %5, %9 : vector<32x128xi1>, vector<32x128xf32>
    %cst_6 = arith.constant dense<0.000000e+00> : vector<32xf32>
    %11 = vector.multi_reduction <add>, %10, %cst_6 [1] : vector<32x128xf32> to vector<32xf32>
    %12 = vector.shape_cast %11 : vector<32xf32> to vector<32x1xf32>
    %cst_7 = arith.constant 3.125000e-02 : f32
    %13 = vector.broadcast %cst_7 : f32 to vector<32x1xf32>
    %14 = arith.mulf %12, %13 : vector<32x1xf32>
    %15 = vector.broadcast %14 : vector<32x1xf32> to vector<32x128xf32>
    %16 = arith.subf %5, %15 : vector<32x128xf32>
    %cst_8 = arith.constant 0.000000e+00 : f32
    %17 = vector.broadcast %cst_8 : f32 to vector<32x128xf32>
    %18 = arith.select %8, %16, %17 : vector<32x128xi1>, vector<32x128xf32>
    %19 = arith.mulf %18, %18 : vector<32x128xf32>
    %cst_9 = arith.constant dense<0.000000e+00> : vector<32xf32>
    %20 = vector.multi_reduction <add>, %19, %cst_9 [1] : vector<32x128xf32> to vector<32xf32>
    %21 = vector.shape_cast %20 : vector<32xf32> to vector<32x1xf32>
    %cst_10 = arith.constant 3.125000e-02 : f32
    %22 = vector.broadcast %cst_10 : f32 to vector<32x1xf32>
    %23 = arith.mulf %21, %22 : vector<32x1xf32>
    %c0_11 = arith.constant 0 : index
    %c0_12 = arith.constant 0 : index
    %24 = vector.load %arg4[%c0_11, %c0_12] : memref<32x1xf32, #tpu.memory_space<vmem>>, vector<32x1xf32>
    %cst_13 = arith.constant 9.99999974E-6 : f32
    %25 = vector.broadcast %cst_13 : f32 to vector<32x1xf32>
    %26 = arith.addf %23, %25 : vector<32x1xf32>
    %27 = math.rsqrt %26 : vector<32x1xf32>
    %28 = arith.mulf %24, %27 : vector<32x1xf32>
    %29 = vector.broadcast %14 : vector<32x1xf32> to vector<32x128xf32>
    %30 = arith.subf %5, %29 : vector<32x128xf32>
    %31 = vector.broadcast %28 : vector<32x1xf32> to vector<32x128xf32>
    %32 = arith.mulf %30, %31 : vector<32x128xf32>
    %c0_14 = arith.constant 0 : index
    %c0_15 = arith.constant 0 : index
    %33 = vector.load %arg5[%c0_14, %c0_15] : memref<32x1xf32, #tpu.memory_space<vmem>>, vector<32x1xf32>
    %34 = vector.broadcast %33 : vector<32x1xf32> to vector<32x128xf32>
    %35 = arith.addf %32, %34 : vector<32x128xf32>
    %cst_16 = arith.constant 0.000000e+00 : f32
    %36 = vector.broadcast %cst_16 : f32 to vector<32x128xf32>
    %37 = arith.cmpf oge, %35, %36 : vector<32x128xf32>
    %cst_17 = arith.constant 2.000000e-01 : f32
    %38 = vector.broadcast %cst_17 : f32 to vector<32x128xf32>
    %39 = arith.mulf %38, %35 : vector<32x128xf32>
    %40 = arith.select %37, %35, %39 : vector<32x128xi1>, vector<32x128xf32>
    %c0_18 = arith.constant 0 : index
    %c0_19 = arith.constant 0 : index
    %41 = vector.load %arg6[%c0_18, %c0_19] : memref<32x128xf32, #tpu.memory_space<vmem>>, vector<32x128xf32>
    tpu.vector_store %arg6[%c0_18, %c0_19], %40 {strides = array<i32>} : memref<32x128xf32, #tpu.memory_space<vmem>>, vector<32x128xf32>,
    return
  }
  func.func @transform_0(%arg0: i32) -> (i32, i32) {
    %c0_i32 = arith.constant 0 : i32
    %c0_i32_0 = arith.constant 0 : i32
    return %c0_i32, %arg0 : i32, i32
  }
  func.func @transform_1(%arg0: i32) -> (i32, i32) {
    %c0_i32 = arith.constant 0 : i32
    %c0_i32_0 = arith.constant 0 : i32
    %c0_i32_1 = arith.constant 0 : i32
    return %c0_i32, %c0_i32_0 : i32, i32
  }
  func.func @transform_2(%arg0: i32) -> (i32, i32) {
    %c0_i32 = arith.constant 0 : i32
    %c0_i32_0 = arith.constant 0 : i32
    %c0_i32_1 = arith.constant 0 : i32
    return %c0_i32, %c0_i32_0 : i32, i32
  }
  func.func @transform_3(%arg0: i32) -> (i32, i32) {
    %c0_i32 = arith.constant 0 : i32
    %c0_i32_0 = arith.constant 0 : i32
    %c0_i32_1 = arith.constant 0 : i32
    return %c0_i32, %c0_i32_0 : i32, i32
  }
  func.func @transform_4(%arg0: i32) -> (i32, i32) {
    %c0_i32 = arith.constant 0 : i32
    %c0_i32_0 = arith.constant 0 : i32
    %c0_i32_1 = arith.constant 0 : i32
    return %c0_i32, %c0_i32_0 : i32, i32
  }
  func.func @transform_5(%arg0: i32) -> (i32, i32) {
    %c0_i32 = arith.constant 0 : i32
    %c0_i32_0 = arith.constant 0 : i32
    return %c0_i32, %arg0 : i32, i32
  }
}

module attributes {stable_mosaic.version = 11 : i64} {
  func.func @conv_bn_lrelu_kernel(%arg0: i32, %arg1: memref<512x128xbf16, #tpu.memory_space<vmem>>, %arg2: memref<64x512xbf16, #tpu.memory_space<vmem>>, %arg3: memref<64x1xf32, #tpu.memory_space<vmem>>, %arg4: memref<64x1xf32, #tpu.memory_space<vmem>>, %arg5: memref<64x1xf32, #tpu.memory_space<vmem>>, %arg6: memref<64x128xf32, #tpu.memory_space<vmem>>) attributes {dimension_semantics = [#tpu.dimension_semantics<parallel>], iteration_bounds = array<i64: 1>, scalar_prefetch = 0 : i64, scratch_operands = 0 : i64, tpu.core_type = #tpu.core_type<tc>, window_params = [{transform_indices = @transform_0, window_bounds = array<i64: 512, 128>}, {pipeline_mode = #tpu.pipeline_mode<synchronous>, transform_indices = @transform_1, window_bounds = array<i64: 64, 512>}, {pipeline_mode = #tpu.pipeline_mode<synchronous>, transform_indices = @transform_2, window_bounds = array<i64: 64, 1>}, {pipeline_mode = #tpu.pipeline_mode<synchronous>, transform_indices = @transform_3, window_bounds = array<i64: 64, 1>}, {pipeline_mode = #tpu.pipeline_mode<synchronous>, transform_indices = @transform_4, window_bounds = array<i64: 64, 1>}, {transform_indices = @transform_5, window_bounds = array<i64: 64, 128>}]} {
    %c0 = arith.constant 0 : index
    %c0_0 = arith.constant 0 : index
    %0 = vector.load %arg2[%c0, %c0_0] : memref<64x512xbf16, #tpu.memory_space<vmem>>, vector<64x512xbf16>
    %c0_1 = arith.constant 0 : index
    %c0_2 = arith.constant 0 : index
    %1 = vector.load %arg1[%c0_1, %c0_2] : memref<512x128xbf16, #tpu.memory_space<vmem>>, vector<512x128xbf16>
    %cst = arith.constant dense<0.000000e+00> : vector<64x128xf32>
    %2 = tpu.matmul %0, %1, %cst {dimension_numbers = #tpu.dot_dimension_numbers<[1], [0], [0], [1], [0, 0, 1, 1], [], []>} : vector<64x512xbf16>, vector<512x128xbf16>, vector<64x128xf32> -> vector<64x128xf32>
    %c0_3 = arith.constant 0 : index
    %c0_4 = arith.constant 0 : index
    %3 = vector.load %arg3[%c0_3, %c0_4] : memref<64x1xf32, #tpu.memory_space<vmem>>, vector<64x1xf32>
    %4 = vector.broadcast %3 : vector<64x1xf32> to vector<64x128xf32>
    %5 = arith.addf %2, %4 : vector<64x128xf32>
    %6 = tpu.iota {dimensions = array<i32: 1>} : vector<64x128xi32>
    %c18_i32 = arith.constant 18 : i32
    %7 = vector.broadcast %c18_i32 : i32 to vector<64x128xi32>
    %8 = arith.cmpi slt, %6, %7 : vector<64x128xi32>
    %cst_5 = arith.constant 0.000000e+00 : f32
    %9 = vector.broadcast %cst_5 : f32 to vector<64x128xf32>
    %10 = arith.select %8, %5, %9 : vector<64x128xi1>, vector<64x128xf32>
    %cst_6 = arith.constant dense<0.000000e+00> : vector<64xf32>
    %11 = vector.multi_reduction <add>, %10, %cst_6 [1] : vector<64x128xf32> to vector<64xf32>
    %12 = vector.shape_cast %11 : vector<64xf32> to vector<64x1xf32>
    %cst_7 = arith.constant 0.055555556 : f32
    %13 = vector.broadcast %cst_7 : f32 to vector<64x1xf32>
    %14 = arith.mulf %12, %13 : vector<64x1xf32>
    %15 = vector.broadcast %14 : vector<64x1xf32> to vector<64x128xf32>
    %16 = arith.subf %5, %15 : vector<64x128xf32>
    %cst_8 = arith.constant 0.000000e+00 : f32
    %17 = vector.broadcast %cst_8 : f32 to vector<64x128xf32>
    %18 = arith.select %8, %16, %17 : vector<64x128xi1>, vector<64x128xf32>
    %19 = arith.mulf %18, %18 : vector<64x128xf32>
    %cst_9 = arith.constant dense<0.000000e+00> : vector<64xf32>
    %20 = vector.multi_reduction <add>, %19, %cst_9 [1] : vector<64x128xf32> to vector<64xf32>
    %21 = vector.shape_cast %20 : vector<64xf32> to vector<64x1xf32>
    %cst_10 = arith.constant 0.055555556 : f32
    %22 = vector.broadcast %cst_10 : f32 to vector<64x1xf32>
    %23 = arith.mulf %21, %22 : vector<64x1xf32>
    %c0_11 = arith.constant 0 : index
    %c0_12 = arith.constant 0 : index
    %24 = vector.load %arg4[%c0_11, %c0_12] : memref<64x1xf32, #tpu.memory_space<vmem>>, vector<64x1xf32>
    %cst_13 = arith.constant 9.99999974E-6 : f32
    %25 = vector.broadcast %cst_13 : f32 to vector<64x1xf32>
    %26 = arith.addf %23, %25 : vector<64x1xf32>
    %27 = math.rsqrt %26 : vector<64x1xf32>
    %28 = arith.mulf %24, %27 : vector<64x1xf32>
    %29 = vector.broadcast %14 : vector<64x1xf32> to vector<64x128xf32>
    %30 = arith.subf %5, %29 : vector<64x128xf32>
    %31 = vector.broadcast %28 : vector<64x1xf32> to vector<64x128xf32>
    %32 = arith.mulf %30, %31 : vector<64x128xf32>
    %c0_14 = arith.constant 0 : index
    %c0_15 = arith.constant 0 : index
    %33 = vector.load %arg5[%c0_14, %c0_15] : memref<64x1xf32, #tpu.memory_space<vmem>>, vector<64x1xf32>
    %34 = vector.broadcast %33 : vector<64x1xf32> to vector<64x128xf32>
    %35 = arith.addf %32, %34 : vector<64x128xf32>
    %cst_16 = arith.constant 0.000000e+00 : f32
    %36 = vector.broadcast %cst_16 : f32 to vector<64x128xf32>
    %37 = arith.cmpf oge, %35, %36 : vector<64x128xf32>
    %cst_17 = arith.constant 2.000000e-01 : f32
    %38 = vector.broadcast %cst_17 : f32 to vector<64x128xf32>
    %39 = arith.mulf %38, %35 : vector<64x128xf32>
    %40 = arith.select %37, %35, %39 : vector<64x128xi1>, vector<64x128xf32>
    %c0_18 = arith.constant 0 : index
    %c0_19 = arith.constant 0 : index
    %41 = vector.load %arg6[%c0_18, %c0_19] : memref<64x128xf32, #tpu.memory_space<vmem>>, vector<64x128xf32>
    tpu.vector_store %arg6[%c0_18, %c0_19], %40 {strides = array<i32>} : memref<64x128xf32, #tpu.memory_space<vmem>>, vector<64x128xf32>,
    return
  }
  func.func @transform_0(%arg0: i32) -> (i32, i32) {
    %c0_i32 = arith.constant 0 : i32
    %c0_i32_0 = arith.constant 0 : i32
    return %c0_i32, %arg0 : i32, i32
  }
  func.func @transform_1(%arg0: i32) -> (i32, i32) {
    %c0_i32 = arith.constant 0 : i32
    %c0_i32_0 = arith.constant 0 : i32
    %c0_i32_1 = arith.constant 0 : i32
    return %c0_i32, %c0_i32_0 : i32, i32
  }
  func.func @transform_2(%arg0: i32) -> (i32, i32) {
    %c0_i32 = arith.constant 0 : i32
    %c0_i32_0 = arith.constant 0 : i32
    %c0_i32_1 = arith.constant 0 : i32
    return %c0_i32, %c0_i32_0 : i32, i32
  }
  func.func @transform_3(%arg0: i32) -> (i32, i32) {
    %c0_i32 = arith.constant 0 : i32
    %c0_i32_0 = arith.constant 0 : i32
    %c0_i32_1 = arith.constant 0 : i32
    return %c0_i32, %c0_i32_0 : i32, i32
  }
  func.func @transform_4(%arg0: i32) -> (i32, i32) {
    %c0_i32 = arith.constant 0 : i32
    %c0_i32_0 = arith.constant 0 : i32
    %c0_i32_1 = arith.constant 0 : i32
    return %c0_i32, %c0_i32_0 : i32, i32
  }
  func.func @transform_5(%arg0: i32) -> (i32, i32) {
    %c0_i32 = arith.constant 0 : i32
    %c0_i32_0 = arith.constant 0 : i32
    return %c0_i32, %arg0 : i32, i32
  }
}

module attributes {stable_mosaic.version = 11 : i64} {
  func.func @conv_bn_lrelu_kernel(%arg0: i32, %arg1: memref<1024x128xbf16, #tpu.memory_space<vmem>>, %arg2: memref<1x1024xbf16, #tpu.memory_space<vmem>>, %arg3: memref<1x1xf32, #tpu.memory_space<vmem>>, %arg4: memref<1x128xf32, #tpu.memory_space<vmem>>) attributes {dimension_semantics = [#tpu.dimension_semantics<parallel>], iteration_bounds = array<i64: 1>, scalar_prefetch = 0 : i64, scratch_operands = 0 : i64, tpu.core_type = #tpu.core_type<tc>, window_params = [{transform_indices = @transform_0, window_bounds = array<i64: 1024, 128>}, {pipeline_mode = #tpu.pipeline_mode<synchronous>, transform_indices = @transform_1, window_bounds = array<i64: 1, 1024>}, {pipeline_mode = #tpu.pipeline_mode<synchronous>, transform_indices = @transform_2, window_bounds = array<i64: 1, 1>}, {transform_indices = @transform_3, window_bounds = array<i64: 1, 128>}]} {
    %c0 = arith.constant 0 : index
    %c0_0 = arith.constant 0 : index
    %0 = vector.load %arg2[%c0, %c0_0] : memref<1x1024xbf16, #tpu.memory_space<vmem>>, vector<1x1024xbf16>
    %c0_1 = arith.constant 0 : index
    %c0_2 = arith.constant 0 : index
    %1 = vector.load %arg1[%c0_1, %c0_2] : memref<1024x128xbf16, #tpu.memory_space<vmem>>, vector<1024x128xbf16>
    %cst = arith.constant dense<0.000000e+00> : vector<1x128xf32>
    %2 = tpu.matmul %0, %1, %cst {dimension_numbers = #tpu.dot_dimension_numbers<[1], [0], [0], [1], [0, 0, 1, 1], [], []>} : vector<1x1024xbf16>, vector<1024x128xbf16>, vector<1x128xf32> -> vector<1x128xf32>
    %c0_3 = arith.constant 0 : index
    %c0_4 = arith.constant 0 : index
    %3 = vector.load %arg3[%c0_3, %c0_4] : memref<1x1xf32, #tpu.memory_space<vmem>>, vector<1x1xf32>
    %4 = vector.broadcast %3 : vector<1x1xf32> to vector<1x128xf32>
    %5 = arith.addf %2, %4 : vector<1x128xf32>
    %c0_5 = arith.constant 0 : index
    %c0_6 = arith.constant 0 : index
    %6 = vector.load %arg4[%c0_5, %c0_6] : memref<1x128xf32, #tpu.memory_space<vmem>>, vector<1x128xf32>
    tpu.vector_store %arg4[%c0_5, %c0_6], %5 {strides = array<i32>} : memref<1x128xf32, #tpu.memory_space<vmem>>, vector<1x128xf32>,
    return
  }
  func.func @transform_0(%arg0: i32) -> (i32, i32) {
    %c0_i32 = arith.constant 0 : i32
    %c0_i32_0 = arith.constant 0 : i32
    return %c0_i32, %arg0 : i32, i32
  }
  func.func @transform_1(%arg0: i32) -> (i32, i32) {
    %c0_i32 = arith.constant 0 : i32
    %c0_i32_0 = arith.constant 0 : i32
    %c0_i32_1 = arith.constant 0 : i32
    return %c0_i32, %c0_i32_0 : i32, i32
  }
  func.func @transform_2(%arg0: i32) -> (i32, i32) {
    %c0_i32 = arith.constant 0 : i32
    %c0_i32_0 = arith.constant 0 : i32
    %c0_i32_1 = arith.constant 0 : i32
    return %c0_i32, %c0_i32_0 : i32, i32
  }
  func.func @transform_3(%arg0: i32) -> (i32, i32) {
    %c0_i32 = arith.constant 0 : i32
    %c0_i32_0 = arith.constant 0 : i32
    return %c0_i32, %arg0 : i32, i32
  }
}

</mosaic_0001>

<llo_original>
// kernel: forward.5
$region0: #{forward.5}
  #allocation0 [shape = 'u32[]', space=smem, size = 0x4, offset = 0x4, fixed_abs, tag = 'smem constant byte address 0x4 - core index']
  #allocation1 [shape = 'u32[72,128]{1,0:T(1,128)}', space=vmem, size = 0x9000, scoped, tag = 'internal scratch']
  %s0 = inlined_call_operand.vmem [shape: bf16[48,512], index: 0, kind: input, shape index: {}]
  %s1 = inlined_call_operand.vmem [shape: bf16[8,48], index: 1, kind: input, shape index: {}]
  %s2 = inlined_call_operand.vmem [shape: f32[8,1], index: 2, kind: input, shape index: {}]
  %s3 = inlined_call_operand.vmem [shape: f32[8,512], index: 3, kind: output, shape index: {}]
  %s4 = sld [smem:[#allocation0]]
  $region22: #{forward.5} parent=0
    _
  %s6 = ssub.s32 1, %s4
  %s7 = scalar_select 0, %s6, %s4
  // Predicated region
  $region2: #{forward.5} parent=0 // pred_check
    _
  $region3: #{forward.5} parent=0 // pred_check_branch
    %9 = sbr.rel (0) target = $region5
  $region4: #{forward.5} parent=0 // pred_region
    _
  $region5: #{forward.5} parent=0 // pred_fallthru
    _
  // Predicated region
  $region6: #{forward.5} parent=0 // pred_check
    _
  $region7: #{forward.5} parent=0 // pred_check_branch
    %11 = sbr.rel (0) target = $region9
  $region8: #{forward.5} parent=0 // pred_region
    _
  $region9: #{forward.5} parent=0 // pred_fallthru
    _
  // Predicated region
  $region10: #{forward.5} parent=0 // pred_check
    _
  $region11: #{forward.5} parent=0 // pred_check_branch
    %13 = sbr.rel (0) target = $region13
  $region12: #{forward.5} parent=0 // pred_region
    _
  $region13: #{forward.5} parent=0 // pred_fallthru
    _
  %v15 = vld [vmem:[%s1] sm:$0xf]
  %v16 = vld [vmem:[%s0] sm:$0xff]
  %v17 = vld [vmem:[%s0 + $0x8] sm:$0xff]
  %v18 = vld [vmem:[%s0 + $0x10] sm:$0xff]
  %v19 = vld [vmem:[%s0 + $0x18] sm:$0xff]
  %v20 = vld [vmem:[%s0 + $0x20] sm:$0xff]
  %v21 = vld [vmem:[%s0 + $0x28] sm:$0xff]
  %v22 = vld [vmem:[%s0 + $0x30] sm:$0xff]
  %v23 = vld [vmem:[%s0 + $0x38] sm:$0xff]
  %v24 = vld [vmem:[%s0 + $0x40] sm:$0xff]
  %v25 = vld [vmem:[%s0 + $0x48] sm:$0xff]
  %v26 = vld [vmem:[%s0 + $0x50] sm:$0xff]
  %v27 = vld [vmem:[%s0 + $0x58] sm:$0xff]
  %v28 = vld [vmem:[%s2] sm:$0xff]
  %30 = vset.pattern.permute.xlu0 0
  %31 = vperm.xlu0 %30, %v28
  %v32 = vpop.permute.xlu0 %31
  %v46 = vunpack.c.l.b16 %v16
  %v47 = vunpack.c.h.b16 %v16
  %v48 = vunpack.c.l.b16 %v17
  %v49 = vunpack.c.h.b16 %v17
  %v50 = vunpack.c.l.b16 %v18
  %v51 = vunpack.c.h.b16 %v18
  %v52 = vunpack.c.l.b16 %v19
  %v53 = vunpack.c.h.b16 %v19
  %v54 = vunpack.c.l.b16 %v20
  %v55 = vunpack.c.h.b16 %v20
  %v56 = vunpack.c.l.b16 %v21
  %v57 = vunpack.c.h.b16 %v21
  %v58 = vunpack.c.l.b16 %v22
  %v59 = vunpack.c.h.b16 %v22
  %v60 = vunpack.c.l.b16 %v23
  %v61 = vunpack.c.h.b16 %v23
  %v62 = vunpack.c.l.b16 %v24
  %v63 = vunpack.c.h.b16 %v24
  %v64 = vunpack.c.l.b16 %v25
  %v65 = vunpack.c.h.b16 %v25
  %v66 = vunpack.c.l.b16 %v26
  %v67 = vunpack.c.h.b16 %v26
  %v68 = vunpack.c.l.b16 %v27
  %v69 = vunpack.c.h.b16 %v27
  %v70 = vpack.c.b16 %v50, %v46
  %v71 = vpack.c.b16 %v51, %v47
  %v72 = vpack.c.b16 %v52, %v48
  %v73 = vpack.c.b16 %v53, %v49
  %v74 = vpack.c.b16 %v58, %v54
  %v75 = vpack.c.b16 %v59, %v55
  %v76 = vpack.c.b16 %v60, %v56
  %v77 = vpack.c.b16 %v61, %v57
  %v78 = vpack.c.b16 %v66, %v62
  %v79 = vpack.c.b16 %v67, %v63
  %v80 = vpack.c.b16 %v68, %v64
  %v81 = vpack.c.b16 %v69, %v65
  %vm94 = vcmask 392192
  %v96 = vsel %vm94, %v15, 0
  %98 = vmatpush.bf16.msra.mxu0 0
  %99 = vmatpush.bf16.msra.mxu0 0
  %100 = vmatpush.bf16.msra.mxu0 0
  %101 = vmatpush.bf16.msra.mxu0 0
  %102 = vmatpush.bf16.msra.mxu0 0
  %103 = vmatpush.bf16.msra.mxu0 %v78
  %104 = vmatpush.bf16.msra.mxu0 %v74
  %105 = vmatpush.bf16.msra.mxu0 %v70
  %106 = vmatmul.bf16.gmra.mxu0 %v96
  %v107 = vpop.f32.mrf.mxu0
  %v108 = vadd.f32 %v32, %v107
  %v109 = vpop.f32.mrf.mxu0
  %110 = vdwg.mxu0
  %111 = vmatpush.bf16.msra.mxu0 0
  %112 = vmatpush.bf16.msra.mxu0 0
  %113 = vmatpush.bf16.msra.mxu0 0
  %114 = vmatpush.bf16.msra.mxu0 0
  %115 = vmatpush.bf16.msra.mxu0 0
  %116 = vmatpush.bf16.msra.mxu0 %v79
  %117 = vmatpush.bf16.msra.mxu0 %v75
  %118 = vmatpush.bf16.msra.mxu0 %v71
  %119 = vmatmul.bf16.gmra.mxu0 %v96
  %v120 = vpop.f32.mrf.mxu0
  %v121 = vadd.f32 %v32, %v120
  %v122 = vpop.f32.mrf.mxu0
  %123 = vdwg.mxu0
  %124 = vmatpush.bf16.msra.mxu0 0
  %125 = vmatpush.bf16.msra.mxu0 0
  %126 = vmatpush.bf16.msra.mxu0 0
  %127 = vmatpush.bf16.msra.mxu0 0
  %128 = vmatpush.bf16.msra.mxu0 0
  %129 = vmatpush.bf16.msra.mxu0 %v80
  %130 = vmatpush.bf16.msra.mxu0 %v76
  %131 = vmatpush.bf16.msra.mxu0 %v72
  %132 = vmatmul.bf16.gmra.mxu0 %v96
  %v133 = vpop.f32.mrf.mxu0
  %v134 = vadd.f32 %v32, %v133
  %v135 = vpop.f32.mrf.mxu0
  %136 = vdwg.mxu0
  %137 = vmatpush.bf16.msra.mxu0 0
  %138 = vmatpush.bf16.msra.mxu0 0
  %139 = vmatpush.bf16.msra.mxu0 0
  %140 = vmatpush.bf16.msra.mxu0 0
  %141 = vmatpush.bf16.msra.mxu0 0
  %142 = vmatpush.bf16.msra.mxu0 %v81
  %143 = vmatpush.bf16.msra.mxu0 %v77
  %144 = vmatpush.bf16.msra.mxu0 %v73
  %145 = vmatmul.bf16.gmra.mxu0 %v96
  %v146 = vpop.f32.mrf.mxu0
  %v147 = vadd.f32 %v32, %v146
  %v148 = vpop.f32.mrf.mxu0
  %149 = vdwg.mxu0
  %vm150 = vcmp.ge.f32.partialorder %v108, 0.0
  %vm151 = vcmp.ge.f32.partialorder %v121, 0.0
  %vm152 = vcmp.ge.f32.partialorder %v134, 0.0
  %vm153 = vcmp.ge.f32.partialorder %v147, 0.0
  %v154 = vmul.f32 %v108, 0.2
  %v155 = vmul.f32 %v121, 0.2
  %v156 = vmul.f32 %v134, 0.2
  %v157 = vmul.f32 %v147, 0.2
  %v158 = vsel %vm150, %v108, %v154
  %v159 = vsel %vm151, %v121, %v155
  %v160 = vsel %vm152, %v134, %v156
  %v161 = vsel %vm153, %v147, %v157
  %162 = vst [vmem:[%s3] sm:$0xff] %v158
  %163 = vst [vmem:[%s3 + $0x8] sm:$0xff] %v159
  %164 = vst [vmem:[%s3 + $0x10] sm:$0xff] %v160
  %165 = vst [vmem:[%s3 + $0x18] sm:$0xff] %v161
  // Predicated region
  $region14: #{forward.5} parent=0 // pred_check
    _
  $region15: #{forward.5} parent=0 // pred_check_branch
    %167 = sbr.rel (0) target = $region17
  $region16: #{forward.5} parent=0 // pred_region
    _
  $region17: #{forward.5} parent=0 // pred_fallthru
    _
  // Predicated region
  $region18: #{forward.5} parent=0 // pred_check
    _
  $region19: #{forward.5} parent=0 // pred_check_branch
    %169 = sbr.rel (0) target = $region21
  $region20: #{forward.5} parent=0 // pred_region
    _
  $region21: #{forward.5} parent=0 // pred_fallthru
    _

// kernel: forward.6
$region0: #{forward.6}
  #allocation0 [shape = 'u32[]', space=smem, size = 0x4, offset = 0x4, fixed_abs, tag = 'smem constant byte address 0x4 - core index']
  #allocation1 [shape = 'u32[72,128]{1,0:T(1,128)}', space=vmem, size = 0x9000, scoped, tag = 'internal scratch']
  %s0 = inlined_call_operand.vmem [shape: bf16[128,128], index: 0, kind: input, shape index: {}]
  %s1 = inlined_call_operand.vmem [shape: bf16[16,128], index: 1, kind: input, shape index: {}]
  %s2 = inlined_call_operand.vmem [shape: f32[16,1], index: 2, kind: input, shape index: {}]
  %s3 = inlined_call_operand.vmem [shape: f32[16,1], index: 3, kind: input, shape index: {}]
  %s4 = inlined_call_operand.vmem [shape: f32[16,1], index: 4, kind: input, shape index: {}]
  %s5 = inlined_call_operand.vmem [shape: f32[16,128], index: 5, kind: output, shape index: {}]
  %s6 = sld [smem:[#allocation0]]
  $region30: #{forward.6} parent=0
    _
  %s8 = ssub.s32 1, %s6
  %s9 = scalar_select 0, %s8, %s6
  // Predicated region
  $region2: #{forward.6} parent=0 // pred_check
    _
  $region3: #{forward.6} parent=0 // pred_check_branch
    %11 = sbr.rel (0) target = $region5
  $region4: #{forward.6} parent=0 // pred_region
    _
  $region5: #{forward.6} parent=0 // pred_fallthru
    _
  // Predicated region
  $region6: #{forward.6} parent=0 // pred_check
    _
  $region7: #{forward.6} parent=0 // pred_check_branch
    %13 = sbr.rel (0) target = $region9
  $region8: #{forward.6} parent=0 // pred_region
    _
  $region9: #{forward.6} parent=0 // pred_fallthru
    _
  // Predicated region
  $region10: #{forward.6} parent=0 // pred_check
    _
  $region11: #{forward.6} parent=0 // pred_check_branch
    %15 = sbr.rel (0) target = $region13
  $region12: #{forward.6} parent=0 // pred_region
    _
  $region13: #{forward.6} parent=0 // pred_fallthru
    _
  // Predicated region
  $region14: #{forward.6} parent=0 // pred_check
    _
  $region15: #{forward.6} parent=0 // pred_check_branch
    %17 = sbr.rel (0) target = $region17
  $region16: #{forward.6} parent=0 // pred_region
    _
  $region17: #{forward.6} parent=0 // pred_fallthru
    _
  // Predicated region
  $region18: #{forward.6} parent=0 // pred_check
    _
  $region19: #{forward.6} parent=0 // pred_check_branch
    %19 = sbr.rel (0) target = $region21
  $region20: #{forward.6} parent=0 // pred_region
    _
  $region21: #{forward.6} parent=0 // pred_fallthru
    _
  %v20 = vld [vmem:[%s1] sm:$0xf]
  %v21 = vld [vmem:[%s1 + $0x4] sm:$0xf]
  %v22 = vld [vmem:[%s0] sm:$0xf]
  %v23 = vld [vmem:[%s0 + $0x4] sm:$0xf]
  %v24 = vld [vmem:[%s0 + $0x8] sm:$0xf]
  %v25 = vld [vmem:[%s0 + $0xc] sm:$0xf]
  %v26 = vld [vmem:[%s0 + $0x10] sm:$0xf]
  %v27 = vld [vmem:[%s0 + $0x14] sm:$0xf]
  %v28 = vld [vmem:[%s0 + $0x18] sm:$0xf]
  %v29 = vld [vmem:[%s0 + $0x1c] sm:$0xf]
  %v30 = vld [vmem:[%s0 + $0x20] sm:$0xf]
  %v31 = vld [vmem:[%s0 + $0x24] sm:$0xf]
  %v32 = vld [vmem:[%s0 + $0x28] sm:$0xf]
  %v33 = vld [vmem:[%s0 + $0x2c] sm:$0xf]
  %v34 = vld [vmem:[%s0 + $0x30] sm:$0xf]
  %v35 = vld [vmem:[%s0 + $0x34] sm:$0xf]
  %v36 = vld [vmem:[%s0 + $0x38] sm:$0xf]
  %v37 = vld [vmem:[%s0 + $0x3c] sm:$0xf]
  %v38 = vld [vmem:[%s2] sm:$0xff]
  %v39 = vld [vmem:[%s2 + $0x8] sm:$0xff]
  %41 = vset.pattern.permute.xlu0 0
  %42 = vperm.xlu0 %41, %v38
  %v43 = vpop.permute.xlu0 %42
  %46 = vset.pattern.permute.xlu0 0
  %47 = vperm.xlu0 %46, %v39
  %v48 = vpop.permute.xlu0 %47
  %v52 = vunpack.c.l.b16 %v20
  %v53 = vunpack.c.l.b16 %v21
  %v54 = vpack.c.b16 %v53, %v52
  %v72 = vunpack.c.l.b16 %v22
  %v73 = vunpack.c.l.b16 %v23
  %v74 = vunpack.c.l.b16 %v24
  %v75 = vunpack.c.l.b16 %v25
  %v76 = vunpack.c.l.b16 %v26
  %v77 = vunpack.c.l.b16 %v27
  %v78 = vunpack.c.l.b16 %v28
  %v79 = vunpack.c.l.b16 %v29
  %v80 = vunpack.c.l.b16 %v30
  %v81 = vunpack.c.l.b16 %v31
  %v82 = vunpack.c.l.b16 %v32
  %v83 = vunpack.c.l.b16 %v33
  %v84 = vunpack.c.l.b16 %v34
  %v85 = vunpack.c.l.b16 %v35
  %v86 = vunpack.c.l.b16 %v36
  %v87 = vunpack.c.l.b16 %v37
  %v88 = vpack.c.b16 %v73, %v72
  %v89 = vpack.c.b16 %v75, %v74
  %v90 = vpack.c.b16 %v77, %v76
  %v91 = vpack.c.b16 %v79, %v78
  %v92 = vpack.c.b16 %v81, %v80
  %v93 = vpack.c.b16 %v83, %v82
  %v94 = vpack.c.b16 %v85, %v84
  %v95 = vpack.c.b16 %v87, %v86
  %104 = vmatpush.bf16.msra.mxu0 %v95
  %105 = vmatpush.bf16.msra.mxu0 %v94
  %106 = vmatpush.bf16.msra.mxu0 %v93
  %107 = vmatpush.bf16.msra.mxu0 %v92
  %108 = vmatpush.bf16.msra.mxu0 %v91
  %109 = vmatpush.bf16.msra.mxu0 %v90
  %110 = vmatpush.bf16.msra.mxu0 %v89
  %111 = vmatpush.bf16.msra.mxu0 %v88
  %112 = vmatmul.bf16.gmra.mxu0 %v54
  %v113 = vpop.f32.mrf.mxu0
  %v114 = vadd.f32 %v43, %v113
  %v115 = vpop.f32.mrf.mxu0
  %v116 = vadd.f32 %v48, %v115
  %117 = vdwg.mxu0
  %v118 = vlaneseq
  %v119 = vand.u32 %v118, 127
  %vm120 = vcmp.lt.s32.totalorder %v119, 128
  %v121 = vsel %vm120, %v114, 0.0
  %v122 = vsel %vm120, %v116, 0.0
  %123 = vadd.xlane.f32.xlu0 %v121
  %v124 = vpop.xlane.xlu0 %123
  %125 = vadd.xlane.f32.xlu0 %v122
  %v126 = vpop.xlane.xlu0 %125
  %v127 = vmul.f32 %v124, 0.0078125
  %v128 = vmul.f32 %v126, 0.0078125
  %v129 = vsub.f32 %v114, %v127
  %v130 = vsub.f32 %v116, %v128
  %v131 = vsel %vm120, %v129, 0.0
  %v132 = vsel %vm120, %v130, 0.0
  %v133 = vmul.f32 %v131, %v131
  %v134 = vmul.f32 %v132, %v132
  %135 = vadd.xlane.f32.xlu0 %v133
  %v136 = vpop.xlane.xlu0 %135
  %137 = vadd.xlane.f32.xlu0 %v134
  %v138 = vpop.xlane.xlu0 %137
  %v139 = vmul.f32 %v136, 0.0078125
  %v140 = vmul.f32 %v138, 0.0078125
  %v141 = vld [vmem:[%s3] sm:$0xff]
  %v142 = vld [vmem:[%s3 + $0x8] sm:$0xff]
  %v143 = vadd.f32 %v139, 1e-05
  %v144 = vadd.f32 %v140, 1e-05
  %v145 = vrsqrt.pop %v143
  %v146 = vmul.f32 %v145, %v143
  %v147 = vmul.f32 %v146, %v145
  %v148 = vmul.f32 0.5, %v147
  %v149 = vsub.f32 1.5, %v148
  %v150 = vmul.f32 %v145, %v149
  %vm151 = vweird.f32 %v143
  %vm152 = vweird.f32 %v145
  %vm153 = vmor %vm151, %vm152
  %v154 = vsel %vm153, %v145, %v150
  %v155 = vrsqrt.pop %v144
  %v156 = vmul.f32 %v155, %v144
  %v157 = vmul.f32 %v156, %v155
  %v158 = vmul.f32 0.5, %v157
  %v159 = vsub.f32 1.5, %v158
  %v160 = vmul.f32 %v155, %v159
  %vm161 = vweird.f32 %v144
  %vm162 = vweird.f32 %v155
  %vm163 = vmor %vm161, %vm162
  %v164 = vsel %vm163, %v155, %v160
  %v165 = vmul.f32 %v141, %v154
  %v166 = vmul.f32 %v142, %v164
  %168 = vset.pattern.permute.xlu0 0
  %169 = vperm.xlu0 %168, %v165
  %v170 = vpop.permute.xlu0 %169
  %173 = vset.pattern.permute.xlu0 0
  %174 = vperm.xlu0 %173, %v166
  %v175 = vpop.permute.xlu0 %174
  %v177 = vmul.f32 %v129, %v170
  %v178 = vmul.f32 %v130, %v175
  %v179 = vld [vmem:[%s4] sm:$0xff]
  %v180 = vld [vmem:[%s4 + $0x8] sm:$0xff]
  %182 = vset.pattern.permute.xlu0 0
  %183 = vperm.xlu0 %182, %v179
  %v184 = vpop.permute.xlu0 %183
  %187 = vset.pattern.permute.xlu0 0
  %188 = vperm.xlu0 %187, %v180
  %v189 = vpop.permute.xlu0 %188
  %v191 = vadd.f32 %v177, %v184
  %v192 = vadd.f32 %v178, %v189
  %vm193 = vcmp.ge.f32.partialorder %v191, 0.0
  %vm194 = vcmp.ge.f32.partialorder %v192, 0.0
  %v195 = vmul.f32 %v191, 0.2
  %v196 = vmul.f32 %v192, 0.2
  %v197 = vsel %vm193, %v191, %v195
  %v198 = vsel %vm194, %v192, %v196
  %199 = vst [vmem:[%s5] sm:$0xff] %v197
  %200 = vst [vmem:[%s5 + $0x8] sm:$0xff] %v198
  // Predicated region
  $region22: #{forward.6} parent=0 // pred_check
    _
  $region23: #{forward.6} parent=0 // pred_check_branch
    %202 = sbr.rel (0) target = $region25
  $region24: #{forward.6} parent=0 // pred_region
    _
  $region25: #{forward.6} parent=0 // pred_fallthru
    _
  // Predicated region
  $region26: #{forward.6} parent=0 // pred_check
    _
  $region27: #{forward.6} parent=0 // pred_check_branch
    %204 = sbr.rel (0) target = $region29
  $region28: #{forward.6} parent=0 // pred_region
    _
  $region29: #{forward.6} parent=0 // pred_fallthru
    _

// kernel: forward.7
$region0: #{forward.7}
  #allocation0 [shape = 'u32[]', space=smem, size = 0x4, offset = 0x4, fixed_abs, tag = 'smem constant byte address 0x4 - core index']
  #allocation1 [shape = 'u32[72,128]{1,0:T(1,128)}', space=vmem, size = 0x9000, scoped, tag = 'internal scratch']
  %s0 = inlined_call_operand.vmem [shape: bf16[256,128], index: 0, kind: input, shape index: {}]
  %s1 = inlined_call_operand.vmem [shape: bf16[32,256], index: 1, kind: input, shape index: {}]
  %s2 = inlined_call_operand.vmem [shape: f32[32,1], index: 2, kind: input, shape index: {}]
  %s3 = inlined_call_operand.vmem [shape: f32[32,1], index: 3, kind: input, shape index: {}]
  %s4 = inlined_call_operand.vmem [shape: f32[32,1], index: 4, kind: input, shape index: {}]
  %s5 = inlined_call_operand.vmem [shape: f32[32,128], index: 5, kind: output, shape index: {}]
  %s6 = sld [smem:[#allocation0]]
  $region30: #{forward.7} parent=0
    _
  %s8 = ssub.s32 1, %s6
  %s9 = scalar_select 0, %s8, %s6
  // Predicated region
  $region2: #{forward.7} parent=0 // pred_check
    _
  $region3: #{forward.7} parent=0 // pred_check_branch
    %11 = sbr.rel (0) target = $region5
  $region4: #{forward.7} parent=0 // pred_region
    _
  $region5: #{forward.7} parent=0 // pred_fallthru
    _
  // Predicated region
  $region6: #{forward.7} parent=0 // pred_check
    _
  $region7: #{forward.7} parent=0 // pred_check_branch
    %13 = sbr.rel (0) target = $region9
  $region8: #{forward.7} parent=0 // pred_region
    _
  $region9: #{forward.7} parent=0 // pred_fallthru
    _
  // Predicated region
  $region10: #{forward.7} parent=0 // pred_check
    _
  $region11: #{forward.7} parent=0 // pred_check_branch
    %15 = sbr.rel (0) target = $region13
  $region12: #{forward.7} parent=0 // pred_region
    _
  $region13: #{forward.7} parent=0 // pred_fallthru
    _
  // Predicated region
  $region14: #{forward.7} parent=0 // pred_check
    _
  $region15: #{forward.7} parent=0 // pred_check_branch
    %17 = sbr.rel (0) target = $region17
  $region16: #{forward.7} parent=0 // pred_region
    _
  $region17: #{forward.7} parent=0 // pred_fallthru
    _
  // Predicated region
  $region18: #{forward.7} parent=0 // pred_check
    _
  $region19: #{forward.7} parent=0 // pred_check_branch
    %19 = sbr.rel (0) target = $region21
  $region20: #{forward.7} parent=0 // pred_region
    _
  $region21: #{forward.7} parent=0 // pred_fallthru
    _
  %v20 = vld [vmem:[%s1] sm:$0xff]
  %v21 = vld [vmem:[%s1 + $0x8] sm:$0xff]
  %v22 = vld [vmem:[%s1 + $0x10] sm:$0xff]
  %v23 = vld [vmem:[%s1 + $0x18] sm:$0xff]
  %v24 = vld [vmem:[%s0] sm:$0xf]
  %v25 = vld [vmem:[%s0 + $0x4] sm:$0xf]
  %v26 = vld [vmem:[%s0 + $0x8] sm:$0xf]
  %v27 = vld [vmem:[%s0 + $0xc] sm:$0xf]
  %v28 = vld [vmem:[%s0 + $0x10] sm:$0xf]
  %v29 = vld [vmem:[%s0 + $0x14] sm:$0xf]
  %v30 = vld [vmem:[%s0 + $0x18] sm:$0xf]
  %v31 = vld [vmem:[%s0 + $0x1c] sm:$0xf]
  %v32 = vld [vmem:[%s0 + $0x20] sm:$0xf]
  %v33 = vld [vmem:[%s0 + $0x24] sm:$0xf]
  %v34 = vld [vmem:[%s0 + $0x28] sm:$0xf]
  %v35 = vld [vmem:[%s0 + $0x2c] sm:$0xf]
  %v36 = vld [vmem:[%s0 + $0x30] sm:$0xf]
  %v37 = vld [vmem:[%s0 + $0x34] sm:$0xf]
  %v38 = vld [vmem:[%s0 + $0x38] sm:$0xf]
  %v39 = vld [vmem:[%s0 + $0x3c] sm:$0xf]
  %v40 = vld [vmem:[%s0 + $0x40] sm:$0xf]
  %v41 = vld [vmem:[%s0 + $0x44] sm:$0xf]
  %v42 = vld [vmem:[%s0 + $0x48] sm:$0xf]
  %v43 = vld [vmem:[%s0 + $0x4c] sm:$0xf]
  %v44 = vld [vmem:[%s0 + $0x50] sm:$0xf]
  %v45 = vld [vmem:[%s0 + $0x54] sm:$0xf]
  %v46 = vld [vmem:[%s0 + $0x58] sm:$0xf]
  %v47 = vld [vmem:[%s0 + $0x5c] sm:$0xf]
  %v48 = vld [vmem:[%s0 + $0x60] sm:$0xf]
  %v49 = vld [vmem:[%s0 + $0x64] sm:$0xf]
  %v50 = vld [vmem:[%s0 + $0x68] sm:$0xf]
  %v51 = vld [vmem:[%s0 + $0x6c] sm:$0xf]
  %v52 = vld [vmem:[%s0 + $0x70] sm:$0xf]
  %v53 = vld [vmem:[%s0 + $0x74] sm:$0xf]
  %v54 = vld [vmem:[%s0 + $0x78] sm:$0xf]
  %v55 = vld [vmem:[%s0 + $0x7c] sm:$0xf]
  %v56 = vld [vmem:[%s2] sm:$0xff]
  %v57 = vld [vmem:[%s2 + $0x8] sm:$0xff]
  %v58 = vld [vmem:[%s2 + $0x10] sm:$0xff]
  %v59 = vld [vmem:[%s2 + $0x18] sm:$0xff]
  %61 = vset.pattern.permute.xlu0 0
  %62 = vperm.xlu0 %61, %v56
  %v63 = vpop.permute.xlu0 %62
  %66 = vset.pattern.permute.xlu0 0
  %67 = vperm.xlu0 %66, %v57
  %v68 = vpop.permute.xlu0 %67
  %71 = vset.pattern.permute.xlu0 0
  %72 = vperm.xlu0 %71, %v58
  %v73 = vpop.permute.xlu0 %72
  %76 = vset.pattern.permute.xlu0 0
  %77 = vperm.xlu0 %76, %v59
  %v78 = vpop.permute.xlu0 %77
  %v84 = vunpack.c.l.b16 %v20
  %v85 = vunpack.c.h.b16 %v20
  %v86 = vunpack.c.l.b16 %v21
  %v87 = vunpack.c.h.b16 %v21
  %v88 = vunpack.c.l.b16 %v22
  %v89 = vunpack.c.h.b16 %v22
  %v90 = vunpack.c.l.b16 %v23
  %v91 = vunpack.c.h.b16 %v23
  %v92 = vpack.c.b16 %v86, %v84
  %v93 = vpack.c.b16 %v87, %v85
  %v94 = vpack.c.b16 %v90, %v88
  %v95 = vpack.c.b16 %v91, %v89
  %v132 = vunpack.c.l.b16 %v24
  %v133 = vunpack.c.l.b16 %v25
  %v134 = vunpack.c.l.b16 %v26
  %v135 = vunpack.c.l.b16 %v27
  %v136 = vunpack.c.l.b16 %v28
  %v137 = vunpack.c.l.b16 %v29
  %v138 = vunpack.c.l.b16 %v30
  %v139 = vunpack.c.l.b16 %v31
  %v140 = vunpack.c.l.b16 %v32
  %v141 = vunpack.c.l.b16 %v33
  %v142 = vunpack.c.l.b16 %v34
  %v143 = vunpack.c.l.b16 %v35
  %v144 = vunpack.c.l.b16 %v36
  %v145 = vunpack.c.l.b16 %v37
  %v146 = vunpack.c.l.b16 %v38
  %v147 = vunpack.c.l.b16 %v39
  %v148 = vunpack.c.l.b16 %v40
  %v149 = vunpack.c.l.b16 %v41
  %v150 = vunpack.c.l.b16 %v42
  %v151 = vunpack.c.l.b16 %v43
  %v152 = vunpack.c.l.b16 %v44
  %v153 = vunpack.c.l.b16 %v45
  %v154 = vunpack.c.l.b16 %v46
  %v155 = vunpack.c.l.b16 %v47
  %v156 = vunpack.c.l.b16 %v48
  %v157 = vunpack.c.l.b16 %v49
  %v158 = vunpack.c.l.b16 %v50
  %v159 = vunpack.c.l.b16 %v51
  %v160 = vunpack.c.l.b16 %v52
  %v161 = vunpack.c.l.b16 %v53
  %v162 = vunpack.c.l.b16 %v54
  %v163 = vunpack.c.l.b16 %v55
  %v164 = vpack.c.b16 %v133, %v132
  %v165 = vpack.c.b16 %v135, %v134
  %v166 = vpack.c.b16 %v137, %v136
  %v167 = vpack.c.b16 %v139, %v138
  %v168 = vpack.c.b16 %v141, %v140
  %v169 = vpack.c.b16 %v143, %v142
  %v170 = vpack.c.b16 %v145, %v144
  %v171 = vpack.c.b16 %v147, %v146
  %v172 = vpack.c.b16 %v149, %v148
  %v173 = vpack.c.b16 %v151, %v150
  %v174 = vpack.c.b16 %v153, %v152
  %v175 = vpack.c.b16 %v155, %v154
  %v176 = vpack.c.b16 %v157, %v156
  %v177 = vpack.c.b16 %v159, %v158
  %v178 = vpack.c.b16 %v161, %v160
  %v179 = vpack.c.b16 %v163, %v162
  %196 = vmatpush.bf16.msra.mxu0 %v171
  %197 = vmatpush.bf16.msra.mxu0 %v170
  %198 = vmatpush.bf16.msra.mxu0 %v169
  %199 = vmatpush.bf16.msra.mxu0 %v168
  %200 = vmatpush.bf16.msra.mxu0 %v167
  %201 = vmatpush.bf16.msra.mxu0 %v166
  %202 = vmatpush.bf16.msra.mxu0 %v165
  %203 = vmatpush.bf16.msra.mxu0 %v164
  %204 = vmatmul.bf16.gmra.mxu0 %v92
  %v205 = vpop.f32.mrf.mxu0
  %v206 = vadd.f32 %v63, %v205
  %v207 = vpop.f32.mrf.mxu0
  %v208 = vadd.f32 %v68, %v207
  %209 = vmatmul.bf16.gmra.mxu0 %v94
  %v210 = vpop.f32.mrf.mxu0
  %v211 = vadd.f32 %v73, %v210
  %v212 = vpop.f32.mrf.mxu0
  %v213 = vadd.f32 %v78, %v212
  %214 = vdwg.mxu0
  %215 = vmatpush.bf16.msra.mxu0 %v179
  %216 = vmatpush.bf16.msra.mxu0 %v178
  %217 = vmatpush.bf16.msra.mxu0 %v177
  %218 = vmatpush.bf16.msra.mxu0 %v176
  %219 = vmatpush.bf16.msra.mxu0 %v175
  %220 = vmatpush.bf16.msra.mxu0 %v174
  %221 = vmatpush.bf16.msra.mxu0 %v173
  %222 = vmatpush.bf16.msra.mxu0 %v172
  %223 = vmatmul.bf16.gmra.mxu0 %v93
  %v224 = vpop.f32.mrf.mxu0
  %v225 = vadd.f32 %v206, %v224
  %v226 = vpop.f32.mrf.mxu0
  %v227 = vadd.f32 %v208, %v226
  %228 = vmatmul.bf16.gmra.mxu0 %v95
  %v229 = vpop.f32.mrf.mxu0
  %v230 = vadd.f32 %v211, %v229
  %v231 = vpop.f32.mrf.mxu0
  %v232 = vadd.f32 %v213, %v231
  %233 = vdwg.mxu0
  %v234 = vlaneseq
  %v235 = vand.u32 %v234, 127
  %vm236 = vcmp.lt.s32.totalorder %v235, 32
  %v237 = vsel %vm236, %v225, 0.0
  %v238 = vsel %vm236, %v227, 0.0
  %v239 = vsel %vm236, %v230, 0.0
  %v240 = vsel %vm236, %v232, 0.0
  %241 = vadd.xlane.f32.xlu0 %v237
  %v242 = vpop.xlane.xlu0 %241
  %243 = vadd.xlane.f32.xlu0 %v238
  %v244 = vpop.xlane.xlu0 %243
  %245 = vadd.xlane.f32.xlu0 %v239
  %v246 = vpop.xlane.xlu0 %245
  %247 = vadd.xlane.f32.xlu0 %v240
  %v248 = vpop.xlane.xlu0 %247
  %v249 = vmul.f32 %v242, 0.03125
  %v250 = vmul.f32 %v244, 0.03125
  %v251 = vmul.f32 %v246, 0.03125
  %v252 = vmul.f32 %v248, 0.03125
  %v253 = vsub.f32 %v225, %v249
  %v254 = vsub.f32 %v227, %v250
  %v255 = vsub.f32 %v230, %v251
  %v256 = vsub.f32 %v232, %v252
  %v257 = vsel %vm236, %v253, 0.0
  %v258 = vsel %vm236, %v254, 0.0
  %v259 = vsel %vm236, %v255, 0.0
  %v260 = vsel %vm236, %v256, 0.0
  %v261 = vmul.f32 %v257, %v257
  %v262 = vmul.f32 %v258, %v258
  %v263 = vmul.f32 %v259, %v259
  %v264 = vmul.f32 %v260, %v260
  %265 = vadd.xlane.f32.xlu0 %v261
  %v266 = vpop.xlane.xlu0 %265
  %267 = vadd.xlane.f32.xlu0 %v262
  %v268 = vpop.xlane.xlu0 %267
  %269 = vadd.xlane.f32.xlu0 %v263
  %v270 = vpop.xlane.xlu0 %269
  %271 = vadd.xlane.f32.xlu0 %v264
  %v272 = vpop.xlane.xlu0 %271
  %v273 = vmul.f32 %v266, 0.03125
  %v274 = vmul.f32 %v268, 0.03125
  %v275 = vmul.f32 %v270, 0.03125
  %v276 = vmul.f32 %v272, 0.03125
  %v277 = vld [vmem:[%s3] sm:$0xff]
  %v278 = vld [vmem:[%s3 + $0x8] sm:$0xff]
  %v279 = vld [vmem:[%s3 + $0x10] sm:$0xff]
  %v280 = vld [vmem:[%s3 + $0x18] sm:$0xff]
  %v281 = vadd.f32 %v273, 1e-05
  %v282 = vadd.f32 %v274, 1e-05
  %v283 = vadd.f32 %v275, 1e-05
  %v284 = vadd.f32 %v276, 1e-05
  %v285 = vrsqrt.pop %v281
  %v286 = vmul.f32 %v285, %v281
  %v287 = vmul.f32 %v286, %v285
  %v288 = vmul.f32 0.5, %v287
  %v289 = vsub.f32 1.5, %v288
  %v290 = vmul.f32 %v285, %v289
  %vm291 = vweird.f32 %v281
  %vm292 = vweird.f32 %v285
  %vm293 = vmor %vm291, %vm292
  %v294 = vsel %vm293, %v285, %v290
  %v295 = vrsqrt.pop %v282
  %v296 = vmul.f32 %v295, %v282
  %v297 = vmul.f32 %v296, %v295
  %v298 = vmul.f32 0.5, %v297
  %v299 = vsub.f32 1.5, %v298
  %v300 = vmul.f32 %v295, %v299
  %vm301 = vweird.f32 %v282
  %vm302 = vweird.f32 %v295
  %vm303 = vmor %vm301, %vm302
  %v304 = vsel %vm303, %v295, %v300
  %v305 = vrsqrt.pop %v283
  %v306 = vmul.f32 %v305, %v283
  %v307 = vmul.f32 %v306, %v305
  %v308 = vmul.f32 0.5, %v307
  %v309 = vsub.f32 1.5, %v308
  %v310 = vmul.f32 %v305, %v309
  %vm311 = vweird.f32 %v283
  %vm312 = vweird.f32 %v305
  %vm313 = vmor %vm311, %vm312
  %v314 = vsel %vm313, %v305, %v310
  %v315 = vrsqrt.pop %v284
  %v316 = vmul.f32 %v315, %v284
  %v317 = vmul.f32 %v316, %v315
  %v318 = vmul.f32 0.5, %v317
  %v319 = vsub.f32 1.5, %v318
  %v320 = vmul.f32 %v315, %v319
  %vm321 = vweird.f32 %v284
  %vm322 = vweird.f32 %v315
  %vm323 = vmor %vm321, %vm322
  %v324 = vsel %vm323, %v315, %v320
  %v325 = vmul.f32 %v277, %v294
  %v326 = vmul.f32 %v278, %v304
  %v327 = vmul.f32 %v279, %v314
  %v328 = vmul.f32 %v280, %v324
  %330 = vset.pattern.permute.xlu0 0
  %331 = vperm.xlu0 %330, %v325
  %v332 = vpop.permute.xlu0 %331
  %335 = vset.pattern.permute.xlu0 0
  %336 = vperm.xlu0 %335, %v326
  %v337 = vpop.permute.xlu0 %336
  %340 = vset.pattern.permute.xlu0 0
  %341 = vperm.xlu0 %340, %v327
  %v342 = vpop.permute.xlu0 %341
  %345 = vset.pattern.permute.xlu0 0
  %346 = vperm.xlu0 %345, %v328
  %v347 = vpop.permute.xlu0 %346
  %v349 = vmul.f32 %v253, %v332
  %v350 = vmul.f32 %v254, %v337
  %v351 = vmul.f32 %v255, %v342
  %v352 = vmul.f32 %v256, %v347
  %v353 = vld [vmem:[%s4] sm:$0xff]
  %v354 = vld [vmem:[%s4 + $0x8] sm:$0xff]
  %v355 = vld [vmem:[%s4 + $0x10] sm:$0xff]
  %v356 = vld [vmem:[%s4 + $0x18] sm:$0xff]
  %358 = vset.pattern.permute.xlu0 0
  %359 = vperm.xlu0 %358, %v353
  %v360 = vpop.permute.xlu0 %359
  %363 = vset.pattern.permute.xlu0 0
  %364 = vperm.xlu0 %363, %v354
  %v365 = vpop.permute.xlu0 %364
  %368 = vset.pattern.permute.xlu0 0
  %369 = vperm.xlu0 %368, %v355
  %v370 = vpop.permute.xlu0 %369
  %373 = vset.pattern.permute.xlu0 0
  %374 = vperm.xlu0 %373, %v356
  %v375 = vpop.permute.xlu0 %374
  %v377 = vadd.f32 %v349, %v360
  %v378 = vadd.f32 %v350, %v365
  %v379 = vadd.f32 %v351, %v370
  %v380 = vadd.f32 %v352, %v375
  %vm381 = vcmp.ge.f32.partialorder %v377, 0.0
  %vm382 = vcmp.ge.f32.partialorder %v378, 0.0
  %vm383 = vcmp.ge.f32.partialorder %v379, 0.0
  %vm384 = vcmp.ge.f32.partialorder %v380, 0.0
  %v385 = vmul.f32 %v377, 0.2
  %v386 = vmul.f32 %v378, 0.2
  %v387 = vmul.f32 %v379, 0.2
  %v388 = vmul.f32 %v380, 0.2
  %v389 = vsel %vm381, %v377, %v385
  %v390 = vsel %vm382, %v378, %v386
  %v391 = vsel %vm383, %v379, %v387
  %v392 = vsel %vm384, %v380, %v388
  %393 = vst [vmem:[%s5] sm:$0xff] %v389
  %394 = vst [vmem:[%s5 + $0x8] sm:$0xff] %v390
  %395 = vst [vmem:[%s5 + $0x10] sm:$0xff] %v391
  %396 = vst [vmem:[%s5 + $0x18] sm:$0xff] %v392
  // Predicated region
  $region22: #{forward.7} parent=0 // pred_check
    _
  $region23: #{forward.7} parent=0 // pred_check_branch
    %398 = sbr.rel (0) target = $region25
  $region24: #{forward.7} parent=0 // pred_region
    _
  $region25: #{forward.7} parent=0 // pred_fallthru
    _
  // Predicated region
  $region26: #{forward.7} parent=0 // pred_check
    _
  $region27: #{forward.7} parent=0 // pred_check_branch
    %400 = sbr.rel (0) target = $region29
  $region28: #{forward.7} parent=0 // pred_region
    _
  $region29: #{forward.7} parent=0 // pred_fallthru
    _

// kernel: forward.8
$region0: #{forward.8}
  #allocation0 [shape = 'u32[]', space=smem, size = 0x4, offset = 0x4, fixed_abs, tag = 'smem constant byte address 0x4 - core index']
  #allocation1 [shape = 'u32[72,128]{1,0:T(1,128)}', space=vmem, size = 0x9000, scoped, tag = 'internal scratch']
  %s0 = inlined_call_operand.vmem [shape: bf16[512,128], index: 0, kind: input, shape index: {}]
  %s1 = inlined_call_operand.vmem [shape: bf16[64,512], index: 1, kind: input, shape index: {}]
  %s2 = inlined_call_operand.vmem [shape: f32[64,1], index: 2, kind: input, shape index: {}]
  %s3 = inlined_call_operand.vmem [shape: f32[64,1], index: 3, kind: input, shape index: {}]
  %s4 = inlined_call_operand.vmem [shape: f32[64,1], index: 4, kind: input, shape index: {}]
  %s5 = inlined_call_operand.vmem [shape: f32[64,128], index: 5, kind: output, shape index: {}]
  %s6 = sld [smem:[#allocation0]]
  $region30: #{forward.8} parent=0
    _
  %s8 = ssub.s32 1, %s6
  %s9 = scalar_select 0, %s8, %s6
  // Predicated region
  $region2: #{forward.8} parent=0 // pred_check
    _
  $region3: #{forward.8} parent=0 // pred_check_branch
    %11 = sbr.rel (0) target = $region5
  $region4: #{forward.8} parent=0 // pred_region
    _
  $region5: #{forward.8} parent=0 // pred_fallthru
    _
  // Predicated region
  $region6: #{forward.8} parent=0 // pred_check
    _
  $region7: #{forward.8} parent=0 // pred_check_branch
    %13 = sbr.rel (0) target = $region9
  $region8: #{forward.8} parent=0 // pred_region
    _
  $region9: #{forward.8} parent=0 // pred_fallthru
    _
  // Predicated region
  $region10: #{forward.8} parent=0 // pred_check
    _
  $region11: #{forward.8} parent=0 // pred_check_branch
    %15 = sbr.rel (0) target = $region13
  $region12: #{forward.8} parent=0 // pred_region
    _
  $region13: #{forward.8} parent=0 // pred_fallthru
    _
  // Predicated region
  $region14: #{forward.8} parent=0 // pred_check
    _
  $region15: #{forward.8} parent=0 // pred_check_branch
    %17 = sbr.rel (0) target = $region17
  $region16: #{forward.8} parent=0 // pred_region
    _
  $region17: #{forward.8} parent=0 // pred_fallthru
    _
  // Predicated region
  $region18: #{forward.8} parent=0 // pred_check
    _
  $region19: #{forward.8} parent=0 // pred_check_branch
    %19 = sbr.rel (0) target = $region21
  $region20: #{forward.8} parent=0 // pred_region
    _
  $region21: #{forward.8} parent=0 // pred_fallthru
    _
  %v20 = vld [vmem:[%s1] sm:$0xff]
  %v21 = vld [vmem:[%s1 + $0x8] sm:$0xff]
  %v22 = vld [vmem:[%s1 + $0x10] sm:$0xff]
  %v23 = vld [vmem:[%s1 + $0x18] sm:$0xff]
  %v24 = vld [vmem:[%s1 + $0x20] sm:$0xff]
  %v25 = vld [vmem:[%s1 + $0x28] sm:$0xff]
  %v26 = vld [vmem:[%s1 + $0x30] sm:$0xff]
  %v27 = vld [vmem:[%s1 + $0x38] sm:$0xff]
  %v28 = vld [vmem:[%s1 + $0x40] sm:$0xff]
  %v29 = vld [vmem:[%s1 + $0x48] sm:$0xff]
  %v30 = vld [vmem:[%s1 + $0x50] sm:$0xff]
  %v31 = vld [vmem:[%s1 + $0x58] sm:$0xff]
  %v32 = vld [vmem:[%s1 + $0x60] sm:$0xff]
  %v33 = vld [vmem:[%s1 + $0x68] sm:$0xff]
  %v34 = vld [vmem:[%s1 + $0x70] sm:$0xff]
  %v35 = vld [vmem:[%s1 + $0x78] sm:$0xff]
  %v36 = vld [vmem:[%s0] sm:$0xf]
  %v37 = vld [vmem:[%s0 + $0x4] sm:$0xf]
  %v38 = vld [vmem:[%s0 + $0x8] sm:$0xf]
  %v39 = vld [vmem:[%s0 + $0xc] sm:$0xf]
  %v40 = vld [vmem:[%s0 + $0x10] sm:$0xf]
  %v41 = vld [vmem:[%s0 + $0x14] sm:$0xf]
  %v42 = vld [vmem:[%s0 + $0x18] sm:$0xf]
  %v43 = vld [vmem:[%s0 + $0x1c] sm:$0xf]
  %v44 = vld [vmem:[%s0 + $0x20] sm:$0xf]
  %v45 = vld [vmem:[%s0 + $0x24] sm:$0xf]
  %v46 = vld [vmem:[%s0 + $0x28] sm:$0xf]
  %v47 = vld [vmem:[%s0 + $0x2c] sm:$0xf]
  %v48 = vld [vmem:[%s0 + $0x30] sm:$0xf]
  %v49 = vld [vmem:[%s0 + $0x34] sm:$0xf]
  %v50 = vld [vmem:[%s0 + $0x38] sm:$0xf]
  %v51 = vld [vmem:[%s0 + $0x3c] sm:$0xf]
  %v52 = vld [vmem:[%s0 + $0x40] sm:$0xf]
  %v53 = vld [vmem:[%s0 + $0x44] sm:$0xf]
  %v54 = vld [vmem:[%s0 + $0x48] sm:$0xf]
  %v55 = vld [vmem:[%s0 + $0x4c] sm:$0xf]
  %v56 = vld [vmem:[%s0 + $0x50] sm:$0xf]
  %v57 = vld [vmem:[%s0 + $0x54] sm:$0xf]
  %v58 = vld [vmem:[%s0 + $0x58] sm:$0xf]
  %v59 = vld [vmem:[%s0 + $0x5c] sm:$0xf]
  %v60 = vld [vmem:[%s0 + $0x60] sm:$0xf]
  %v61 = vld [vmem:[%s0 + $0x64] sm:$0xf]
  %v62 = vld [vmem:[%s0 + $0x68] sm:$0xf]
  %v63 = vld [vmem:[%s0 + $0x6c] sm:$0xf]
  %v64 = vld [vmem:[%s0 + $0x70] sm:$0xf]
  %v65 = vld [vmem:[%s0 + $0x74] sm:$0xf]
  %v66 = vld [vmem:[%s0 + $0x78] sm:$0xf]
  %v67 = vld [vmem:[%s0 + $0x7c] sm:$0xf]
  %v68 = vld [vmem:[%s0 + $0x80] sm:$0xf]
  %v69 = vld [vmem:[%s0 + $0x84] sm:$0xf]
  %v70 = vld [vmem:[%s0 + $0x88] sm:$0xf]
  %v71 = vld [vmem:[%s0 + $0x8c] sm:$0xf]
  %v72 = vld [vmem:[%s0 + $0x90] sm:$0xf]
  %v73 = vld [vmem:[%s0 + $0x94] sm:$0xf]
  %v74 = vld [vmem:[%s0 + $0x98] sm:$0xf]
  %v75 = vld [vmem:[%s0 + $0x9c] sm:$0xf]
  %v76 = vld [vmem:[%s0 + $0xa0] sm:$0xf]
  %v77 = vld [vmem:[%s0 + $0xa4] sm:$0xf]
  %v78 = vld [vmem:[%s0 + $0xa8] sm:$0xf]
  %v79 = vld [vmem:[%s0 + $0xac] sm:$0xf]
  %v80 = vld [vmem:[%s0 + $0xb0] sm:$0xf]
  %v81 = vld [vmem:[%s0 + $0xb4] sm:$0xf]
  %v82 = vld [vmem:[%s0 + $0xb8] sm:$0xf]
  %v83 = vld [vmem:[%s0 + $0xbc] sm:$0xf]
  %v84 = vld [vmem:[%s0 + $0xc0] sm:$0xf]
  %v85 = vld [vmem:[%s0 + $0xc4] sm:$0xf]
  %v86 = vld [vmem:[%s0 + $0xc8] sm:$0xf]
  %v87 = vld [vmem:[%s0 + $0xcc] sm:$0xf]
  %v88 = vld [vmem:[%s0 + $0xd0] sm:$0xf]
  %v89 = vld [vmem:[%s0 + $0xd4] sm:$0xf]
  %v90 = vld [vmem:[%s0 + $0xd8] sm:$0xf]
  %v91 = vld [vmem:[%s0 + $0xdc] sm:$0xf]
  %v92 = vld [vmem:[%s0 + $0xe0] sm:$0xf]
  %v93 = vld [vmem:[%s0 + $0xe4] sm:$0xf]
  %v94 = vld [vmem:[%s0 + $0xe8] sm:$0xf]
  %v95 = vld [vmem:[%s0 + $0xec] sm:$0xf]
  %v96 = vld [vmem:[%s0 + $0xf0] sm:$0xf]
  %v97 = vld [vmem:[%s0 + $0xf4] sm:$0xf]
  %v98 = vld [vmem:[%s0 + $0xf8] sm:$0xf]
  %v99 = vld [vmem:[%s0 + $0xfc] sm:$0xf]
  %v100 = vld [vmem:[%s2] sm:$0xff]
  %v101 = vld [vmem:[%s2 + $0x8] sm:$0xff]
  %v102 = vld [vmem:[%s2 + $0x10] sm:$0xff]
  %v103 = vld [vmem:[%s2 + $0x18] sm:$0xff]
  %v104 = vld [vmem:[%s2 + $0x20] sm:$0xff]
  %v105 = vld [vmem:[%s2 + $0x28] sm:$0xff]
  %v106 = vld [vmem:[%s2 + $0x30] sm:$0xff]
  %v107 = vld [vmem:[%s2 + $0x38] sm:$0xff]
  %109 = vset.pattern.permute.xlu0 0
  %110 = vperm.xlu0 %109, %v100
  %v111 = vpop.permute.xlu0 %110
  %114 = vset.pattern.permute.xlu0 0
  %115 = vperm.xlu0 %114, %v101
  %v116 = vpop.permute.xlu0 %115
  %119 = vset.pattern.permute.xlu0 0
  %120 = vperm.xlu0 %119, %v102
  %v121 = vpop.permute.xlu0 %120
  %124 = vset.pattern.permute.xlu0 0
  %125 = vperm.xlu0 %124, %v103
  %v126 = vpop.permute.xlu0 %125
  %129 = vset.pattern.permute.xlu0 0
  %130 = vperm.xlu0 %129, %v104
  %v131 = vpop.permute.xlu0 %130
  %134 = vset.pattern.permute.xlu0 0
  %135 = vperm.xlu0 %134, %v105
  %v136 = vpop.permute.xlu0 %135
  %139 = vset.pattern.permute.xlu0 0
  %140 = vperm.xlu0 %139, %v106
  %v141 = vpop.permute.xlu0 %140
  %144 = vset.pattern.permute.xlu0 0
  %145 = vperm.xlu0 %144, %v107
  %v146 = vpop.permute.xlu0 %145
  %v164 = vunpack.c.l.b16 %v20
  %v165 = vunpack.c.h.b16 %v20
  %v166 = vunpack.c.l.b16 %v21
  %v167 = vunpack.c.h.b16 %v21
  %v168 = vunpack.c.l.b16 %v22
  %v169 = vunpack.c.h.b16 %v22
  %v170 = vunpack.c.l.b16 %v23
  %v171 = vunpack.c.h.b16 %v23
  %v172 = vunpack.c.l.b16 %v24
  %v173 = vunpack.c.h.b16 %v24
  %v174 = vunpack.c.l.b16 %v25
  %v175 = vunpack.c.h.b16 %v25
  %v176 = vunpack.c.l.b16 %v26
  %v177 = vunpack.c.h.b16 %v26
  %v178 = vunpack.c.l.b16 %v27
  %v179 = vunpack.c.h.b16 %v27
  %v180 = vunpack.c.l.b16 %v28
  %v181 = vunpack.c.h.b16 %v28
  %v182 = vunpack.c.l.b16 %v29
  %v183 = vunpack.c.h.b16 %v29
  %v184 = vunpack.c.l.b16 %v30
  %v185 = vunpack.c.h.b16 %v30
  %v186 = vunpack.c.l.b16 %v31
  %v187 = vunpack.c.h.b16 %v31
  %v188 = vunpack.c.l.b16 %v32
  %v189 = vunpack.c.h.b16 %v32
  %v190 = vunpack.c.l.b16 %v33
  %v191 = vunpack.c.h.b16 %v33
  %v192 = vunpack.c.l.b16 %v34
  %v193 = vunpack.c.h.b16 %v34
  %v194 = vunpack.c.l.b16 %v35
  %v195 = vunpack.c.h.b16 %v35
  %v196 = vpack.c.b16 %v168, %v164
  %v197 = vpack.c.b16 %v169, %v165
  %v198 = vpack.c.b16 %v170, %v166
  %v199 = vpack.c.b16 %v171, %v167
  %v200 = vpack.c.b16 %v176, %v172
  %v201 = vpack.c.b16 %v177, %v173
  %v202 = vpack.c.b16 %v178, %v174
  %v203 = vpack.c.b16 %v179, %v175
  %v204 = vpack.c.b16 %v184, %v180
  %v205 = vpack.c.b16 %v185, %v181
  %v206 = vpack.c.b16 %v186, %v182
  %v207 = vpack.c.b16 %v187, %v183
  %v208 = vpack.c.b16 %v192, %v188
  %v209 = vpack.c.b16 %v193, %v189
  %v210 = vpack.c.b16 %v194, %v190
  %v211 = vpack.c.b16 %v195, %v191
  %v292 = vunpack.c.l.b16 %v36
  %v293 = vunpack.c.l.b16 %v37
  %v294 = vunpack.c.l.b16 %v38
  %v295 = vunpack.c.l.b16 %v39
  %v296 = vunpack.c.l.b16 %v40
  %v297 = vunpack.c.l.b16 %v41
  %v298 = vunpack.c.l.b16 %v42
  %v299 = vunpack.c.l.b16 %v43
  %v300 = vunpack.c.l.b16 %v44
  %v301 = vunpack.c.l.b16 %v45
  %v302 = vunpack.c.l.b16 %v46
  %v303 = vunpack.c.l.b16 %v47
  %v304 = vunpack.c.l.b16 %v48
  %v305 = vunpack.c.l.b16 %v49
  %v306 = vunpack.c.l.b16 %v50
  %v307 = vunpack.c.l.b16 %v51
  %v308 = vunpack.c.l.b16 %v52
  %v309 = vunpack.c.l.b16 %v53
  %v310 = vunpack.c.l.b16 %v54
  %v311 = vunpack.c.l.b16 %v55
  %v312 = vunpack.c.l.b16 %v56
  %v313 = vunpack.c.l.b16 %v57
  %v314 = vunpack.c.l.b16 %v58
  %v315 = vunpack.c.l.b16 %v59
  %v316 = vunpack.c.l.b16 %v60
  %v317 = vunpack.c.l.b16 %v61
  %v318 = vunpack.c.l.b16 %v62
  %v319 = vunpack.c.l.b16 %v63
  %v320 = vunpack.c.l.b16 %v64
  %v321 = vunpack.c.l.b16 %v65
  %v322 = vunpack.c.l.b16 %v66
  %v323 = vunpack.c.l.b16 %v67
  %v324 = vunpack.c.l.b16 %v68
  %v325 = vunpack.c.l.b16 %v69
  %v326 = vunpack.c.l.b16 %v70
  %v327 = vunpack.c.l.b16 %v71
  %v328 = vunpack.c.l.b16 %v72
  %v329 = vunpack.c.l.b16 %v73
  %v330 = vunpack.c.l.b16 %v74
  %v331 = vunpack.c.l.b16 %v75
  %v332 = vunpack.c.l.b16 %v76
  %v333 = vunpack.c.l.b16 %v77
  %v334 = vunpack.c.l.b16 %v78
  %v335 = vunpack.c.l.b16 %v79
  %v336 = vunpack.c.l.b16 %v80
  %v337 = vunpack.c.l.b16 %v81
  %v338 = vunpack.c.l.b16 %v82
  %v339 = vunpack.c.l.b16 %v83
  %v340 = vunpack.c.l.b16 %v84
  %v341 = vunpack.c.l.b16 %v85
  %v342 = vunpack.c.l.b16 %v86
  %v343 = vunpack.c.l.b16 %v87
  %v344 = vunpack.c.l.b16 %v88
  %v345 = vunpack.c.l.b16 %v89
  %v346 = vunpack.c.l.b16 %v90
  %v347 = vunpack.c.l.b16 %v91
  %v348 = vunpack.c.l.b16 %v92
  %v349 = vunpack.c.l.b16 %v93
  %v350 = vunpack.c.l.b16 %v94
  %v351 = vunpack.c.l.b16 %v95
  %v352 = vunpack.c.l.b16 %v96
  %v353 = vunpack.c.l.b16 %v97
  %v354 = vunpack.c.l.b16 %v98
  %v355 = vunpack.c.l.b16 %v99
  %v356 = vpack.c.b16 %v293, %v292
  %v357 = vpack.c.b16 %v295, %v294
  %v358 = vpack.c.b16 %v297, %v296
  %v359 = vpack.c.b16 %v299, %v298
  %v360 = vpack.c.b16 %v301, %v300
  %v361 = vpack.c.b16 %v303, %v302
  %v362 = vpack.c.b16 %v305, %v304
  %v363 = vpack.c.b16 %v307, %v306
  %v364 = vpack.c.b16 %v309, %v308
  %v365 = vpack.c.b16 %v311, %v310
  %v366 = vpack.c.b16 %v313, %v312
  %v367 = vpack.c.b16 %v315, %v314
  %v368 = vpack.c.b16 %v317, %v316
  %v369 = vpack.c.b16 %v319, %v318
  %v370 = vpack.c.b16 %v321, %v320
  %v371 = vpack.c.b16 %v323, %v322
  %v372 = vpack.c.b16 %v325, %v324
  %v373 = vpack.c.b16 %v327, %v326
  %v374 = vpack.c.b16 %v329, %v328
  %v375 = vpack.c.b16 %v331, %v330
  %v376 = vpack.c.b16 %v333, %v332
  %v377 = vpack.c.b16 %v335, %v334
  %v378 = vpack.c.b16 %v337, %v336
  %v379 = vpack.c.b16 %v339, %v338
  %v380 = vpack.c.b16 %v341, %v340
  %v381 = vpack.c.b16 %v343, %v342
  %v382 = vpack.c.b16 %v345, %v344
  %v383 = vpack.c.b16 %v347, %v346
  %v384 = vpack.c.b16 %v349, %v348
  %v385 = vpack.c.b16 %v351, %v350
  %v386 = vpack.c.b16 %v353, %v352
  %v387 = vpack.c.b16 %v355, %v354
  %420 = vmatpush.bf16.msra.mxu0 %v363
  %421 = vmatpush.bf16.msra.mxu0 %v362
  %422 = vmatpush.bf16.msra.mxu0 %v361
  %423 = vmatpush.bf16.msra.mxu0 %v360
  %424 = vmatpush.bf16.msra.mxu0 %v359
  %425 = vmatpush.bf16.msra.mxu0 %v358
  %426 = vmatpush.bf16.msra.mxu0 %v357
  %427 = vmatpush.bf16.msra.mxu0 %v356
  %428 = vmatmul.bf16.gmra.mxu0 %v196
  %v429 = vpop.f32.mrf.mxu0
  %v430 = vadd.f32 %v111, %v429
  %v431 = vpop.f32.mrf.mxu0
  %v432 = vadd.f32 %v116, %v431
  %433 = vmatmul.bf16.gmra.mxu0 %v200
  %v434 = vpop.f32.mrf.mxu0
  %v435 = vadd.f32 %v121, %v434
  %v436 = vpop.f32.mrf.mxu0
  %v437 = vadd.f32 %v126, %v436
  %438 = vmatmul.bf16.gmra.mxu0 %v204
  %v439 = vpop.f32.mrf.mxu0
  %v440 = vadd.f32 %v131, %v439
  %v441 = vpop.f32.mrf.mxu0
  %v442 = vadd.f32 %v136, %v441
  %443 = vmatmul.bf16.gmra.mxu0 %v208
  %v444 = vpop.f32.mrf.mxu0
  %v445 = vadd.f32 %v141, %v444
  %v446 = vpop.f32.mrf.mxu0
  %v447 = vadd.f32 %v146, %v446
  %448 = vdwg.mxu0
  %449 = vmatpush.bf16.msra.mxu0 %v371
  %450 = vmatpush.bf16.msra.mxu0 %v370
  %451 = vmatpush.bf16.msra.mxu0 %v369
  %452 = vmatpush.bf16.msra.mxu0 %v368
  %453 = vmatpush.bf16.msra.mxu0 %v367
  %454 = vmatpush.bf16.msra.mxu0 %v366
  %455 = vmatpush.bf16.msra.mxu0 %v365
  %456 = vmatpush.bf16.msra.mxu0 %v364
  %457 = vmatmul.bf16.gmra.mxu0 %v197
  %v458 = vpop.f32.mrf.mxu0
  %v459 = vadd.f32 %v430, %v458
  %v460 = vpop.f32.mrf.mxu0
  %v461 = vadd.f32 %v432, %v460
  %462 = vmatmul.bf16.gmra.mxu0 %v201
  %v463 = vpop.f32.mrf.mxu0
  %v464 = vadd.f32 %v435, %v463
  %v465 = vpop.f32.mrf.mxu0
  %v466 = vadd.f32 %v437, %v465
  %467 = vmatmul.bf16.gmra.mxu0 %v205
  %v468 = vpop.f32.mrf.mxu0
  %v469 = vadd.f32 %v440, %v468
  %v470 = vpop.f32.mrf.mxu0
  %v471 = vadd.f32 %v442, %v470
  %472 = vmatmul.bf16.gmra.mxu0 %v209
  %v473 = vpop.f32.mrf.mxu0
  %v474 = vadd.f32 %v445, %v473
  %v475 = vpop.f32.mrf.mxu0
  %v476 = vadd.f32 %v447, %v475
  %477 = vdwg.mxu0
  %478 = vmatpush.bf16.msra.mxu0 %v379
  %479 = vmatpush.bf16.msra.mxu0 %v378
  %480 = vmatpush.bf16.msra.mxu0 %v377
  %481 = vmatpush.bf16.msra.mxu0 %v376
  %482 = vmatpush.bf16.msra.mxu0 %v375
  %483 = vmatpush.bf16.msra.mxu0 %v374
  %484 = vmatpush.bf16.msra.mxu0 %v373
  %485 = vmatpush.bf16.msra.mxu0 %v372
  %486 = vmatmul.bf16.gmra.mxu0 %v198
  %v487 = vpop.f32.mrf.mxu0
  %v488 = vadd.f32 %v459, %v487
  %v489 = vpop.f32.mrf.mxu0
  %v490 = vadd.f32 %v461, %v489
  %491 = vmatmul.bf16.gmra.mxu0 %v202
  %v492 = vpop.f32.mrf.mxu0
  %v493 = vadd.f32 %v464, %v492
  %v494 = vpop.f32.mrf.mxu0
  %v495 = vadd.f32 %v466, %v494
  %496 = vmatmul.bf16.gmra.mxu0 %v206
  %v497 = vpop.f32.mrf.mxu0
  %v498 = vadd.f32 %v469, %v497
  %v499 = vpop.f32.mrf.mxu0
  %v500 = vadd.f32 %v471, %v499
  %501 = vmatmul.bf16.gmra.mxu0 %v210
  %v502 = vpop.f32.mrf.mxu0
  %v503 = vadd.f32 %v474, %v502
  %v504 = vpop.f32.mrf.mxu0
  %v505 = vadd.f32 %v476, %v504
  %506 = vdwg.mxu0
  %507 = vmatpush.bf16.msra.mxu0 %v387
  %508 = vmatpush.bf16.msra.mxu0 %v386
  %509 = vmatpush.bf16.msra.mxu0 %v385
  %510 = vmatpush.bf16.msra.mxu0 %v384
  %511 = vmatpush.bf16.msra.mxu0 %v383
  %512 = vmatpush.bf16.msra.mxu0 %v382
  %513 = vmatpush.bf16.msra.mxu0 %v381
  %514 = vmatpush.bf16.msra.mxu0 %v380
  %515 = vmatmul.bf16.gmra.mxu0 %v199
  %v516 = vpop.f32.mrf.mxu0
  %v517 = vadd.f32 %v488, %v516
  %v518 = vpop.f32.mrf.mxu0
  %v519 = vadd.f32 %v490, %v518
  %520 = vmatmul.bf16.gmra.mxu0 %v203
  %v521 = vpop.f32.mrf.mxu0
  %v522 = vadd.f32 %v493, %v521
  %v523 = vpop.f32.mrf.mxu0
  %v524 = vadd.f32 %v495, %v523
  %525 = vmatmul.bf16.gmra.mxu0 %v207
  %v526 = vpop.f32.mrf.mxu0
  %v527 = vadd.f32 %v498, %v526
  %v528 = vpop.f32.mrf.mxu0
  %v529 = vadd.f32 %v500, %v528
  %530 = vmatmul.bf16.gmra.mxu0 %v211
  %v531 = vpop.f32.mrf.mxu0
  %v532 = vadd.f32 %v503, %v531
  %v533 = vpop.f32.mrf.mxu0
  %v534 = vadd.f32 %v505, %v533
  %535 = vdwg.mxu0
  %v536 = vlaneseq
  %v537 = vand.u32 %v536, 127
  %vm538 = vcmp.lt.s32.totalorder %v537, 18
  %v539 = vsel %vm538, %v517, 0.0
  %v540 = vsel %vm538, %v519, 0.0
  %v541 = vsel %vm538, %v522, 0.0
  %v542 = vsel %vm538, %v524, 0.0
  %v543 = vsel %vm538, %v527, 0.0
  %v544 = vsel %vm538, %v529, 0.0
  %v545 = vsel %vm538, %v532, 0.0
  %v546 = vsel %vm538, %v534, 0.0
  %547 = vadd.xlane.f32.xlu0 %v539
  %v548 = vpop.xlane.xlu0 %547
  %549 = vadd.xlane.f32.xlu0 %v540
  %v550 = vpop.xlane.xlu0 %549
  %551 = vadd.xlane.f32.xlu0 %v541
  %v552 = vpop.xlane.xlu0 %551
  %553 = vadd.xlane.f32.xlu0 %v542
  %v554 = vpop.xlane.xlu0 %553
  %555 = vadd.xlane.f32.xlu0 %v543
  %v556 = vpop.xlane.xlu0 %555
  %557 = vadd.xlane.f32.xlu0 %v544
  %v558 = vpop.xlane.xlu0 %557
  %559 = vadd.xlane.f32.xlu0 %v545
  %v560 = vpop.xlane.xlu0 %559
  %561 = vadd.xlane.f32.xlu0 %v546
  %v562 = vpop.xlane.xlu0 %561
  %v563 = vmul.f32 %v548, 0.055555556
  %v564 = vmul.f32 %v550, 0.055555556
  %v565 = vmul.f32 %v552, 0.055555556
  %v566 = vmul.f32 %v554, 0.055555556
  %v567 = vmul.f32 %v556, 0.055555556
  %v568 = vmul.f32 %v558, 0.055555556
  %v569 = vmul.f32 %v560, 0.055555556
  %v570 = vmul.f32 %v562, 0.055555556
  %v571 = vsub.f32 %v517, %v563
  %v572 = vsub.f32 %v519, %v564
  %v573 = vsub.f32 %v522, %v565
  %v574 = vsub.f32 %v524, %v566
  %v575 = vsub.f32 %v527, %v567
  %v576 = vsub.f32 %v529, %v568
  %v577 = vsub.f32 %v532, %v569
  %v578 = vsub.f32 %v534, %v570
  %v579 = vsel %vm538, %v571, 0.0
  %v580 = vsel %vm538, %v572, 0.0
  %v581 = vsel %vm538, %v573, 0.0
  %v582 = vsel %vm538, %v574, 0.0
  %v583 = vsel %vm538, %v575, 0.0
  %v584 = vsel %vm538, %v576, 0.0
  %v585 = vsel %vm538, %v577, 0.0
  %v586 = vsel %vm538, %v578, 0.0
  %v587 = vmul.f32 %v579, %v579
  %v588 = vmul.f32 %v580, %v580
  %v589 = vmul.f32 %v581, %v581
  %v590 = vmul.f32 %v582, %v582
  %v591 = vmul.f32 %v583, %v583
  %v592 = vmul.f32 %v584, %v584
  %v593 = vmul.f32 %v585, %v585
  %v594 = vmul.f32 %v586, %v586
  %595 = vadd.xlane.f32.xlu0 %v587
  %v596 = vpop.xlane.xlu0 %595
  %597 = vadd.xlane.f32.xlu0 %v588
  %v598 = vpop.xlane.xlu0 %597
  %599 = vadd.xlane.f32.xlu0 %v589
  %v600 = vpop.xlane.xlu0 %599
  %601 = vadd.xlane.f32.xlu0 %v590
  %v602 = vpop.xlane.xlu0 %601
  %603 = vadd.xlane.f32.xlu0 %v591
  %v604 = vpop.xlane.xlu0 %603
  %605 = vadd.xlane.f32.xlu0 %v592
  %v606 = vpop.xlane.xlu0 %605
  %607 = vadd.xlane.f32.xlu0 %v593
  %v608 = vpop.xlane.xlu0 %607
  %609 = vadd.xlane.f32.xlu0 %v594
  %v610 = vpop.xlane.xlu0 %609
  %v611 = vmul.f32 %v596, 0.055555556
  %v612 = vmul.f32 %v598, 0.055555556
  %v613 = vmul.f32 %v600, 0.055555556
  %v614 = vmul.f32 %v602, 0.055555556
  %v615 = vmul.f32 %v604, 0.055555556
  %v616 = vmul.f32 %v606, 0.055555556
  %v617 = vmul.f32 %v608, 0.055555556
  %v618 = vmul.f32 %v610, 0.055555556
  %v619 = vld [vmem:[%s3] sm:$0xff]
  %v620 = vld [vmem:[%s3 + $0x8] sm:$0xff]
  %v621 = vld [vmem:[%s3 + $0x10] sm:$0xff]
  %v622 = vld [vmem:[%s3 + $0x18] sm:$0xff]
  %v623 = vld [vmem:[%s3 + $0x20] sm:$0xff]
  %v624 = vld [vmem:[%s3 + $0x28] sm:$0xff]
  %v625 = vld [vmem:[%s3 + $0x30] sm:$0xff]
  %v626 = vld [vmem:[%s3 + $0x38] sm:$0xff]
  %v627 = vadd.f32 %v611, 1e-05
  %v628 = vadd.f32 %v612, 1e-05
  %v629 = vadd.f32 %v613, 1e-05
  %v630 = vadd.f32 %v614, 1e-05
  %v631 = vadd.f32 %v615, 1e-05
  %v632 = vadd.f32 %v616, 1e-05
  %v633 = vadd.f32 %v617, 1e-05
  %v634 = vadd.f32 %v618, 1e-05
  %v635 = vrsqrt.pop %v627
  %v636 = vmul.f32 %v635, %v627
  %v637 = vmul.f32 %v636, %v635
  %v638 = vmul.f32 0.5, %v637
  %v639 = vsub.f32 1.5, %v638
  %v640 = vmul.f32 %v635, %v639
  %vm641 = vweird.f32 %v627
  %vm642 = vweird.f32 %v635
  %vm643 = vmor %vm641, %vm642
  %v644 = vsel %vm643, %v635, %v640
  %v645 = vrsqrt.pop %v628
  %v646 = vmul.f32 %v645, %v628
  %v647 = vmul.f32 %v646, %v645
  %v648 = vmul.f32 0.5, %v647
  %v649 = vsub.f32 1.5, %v648
  %v650 = vmul.f32 %v645, %v649
  %vm651 = vweird.f32 %v628
  %vm652 = vweird.f32 %v645
  %vm653 = vmor %vm651, %vm652
  %v654 = vsel %vm653, %v645, %v650
  %v655 = vrsqrt.pop %v629
  %v656 = vmul.f32 %v655, %v629
  %v657 = vmul.f32 %v656, %v655
  %v658 = vmul.f32 0.5, %v657
  %v659 = vsub.f32 1.5, %v658
  %v660 = vmul.f32 %v655, %v659
  %vm661 = vweird.f32 %v629
  %vm662 = vweird.f32 %v655
  %vm663 = vmor %vm661, %vm662
  %v664 = vsel %vm663, %v655, %v660
  %v665 = vrsqrt.pop %v630
  %v666 = vmul.f32 %v665, %v630
  %v667 = vmul.f32 %v666, %v665
  %v668 = vmul.f32 0.5, %v667
  %v669 = vsub.f32 1.5, %v668
  %v670 = vmul.f32 %v665, %v669
  %vm671 = vweird.f32 %v630
  %vm672 = vweird.f32 %v665
  %vm673 = vmor %vm671, %vm672
  %v674 = vsel %vm673, %v665, %v670
  %v675 = vrsqrt.pop %v631
  %v676 = vmul.f32 %v675, %v631
  %v677 = vmul.f32 %v676, %v675
  %v678 = vmul.f32 0.5, %v677
  %v679 = vsub.f32 1.5, %v678
  %v680 = vmul.f32 %v675, %v679
  %vm681 = vweird.f32 %v631
  %vm682 = vweird.f32 %v675
  %vm683 = vmor %vm681, %vm682
  %v684 = vsel %vm683, %v675, %v680
  %v685 = vrsqrt.pop %v632
  %v686 = vmul.f32 %v685, %v632
  %v687 = vmul.f32 %v686, %v685
  %v688 = vmul.f32 0.5, %v687
  %v689 = vsub.f32 1.5, %v688
  %v690 = vmul.f32 %v685, %v689
  %vm691 = vweird.f32 %v632
  %vm692 = vweird.f32 %v685
  %vm693 = vmor %vm691, %vm692
  %v694 = vsel %vm693, %v685, %v690
  %v695 = vrsqrt.pop %v633
  %v696 = vmul.f32 %v695, %v633
  %v697 = vmul.f32 %v696, %v695
  %v698 = vmul.f32 0.5, %v697
  %v699 = vsub.f32 1.5, %v698
  %v700 = vmul.f32 %v695, %v699
  %vm701 = vweird.f32 %v633
  %vm702 = vweird.f32 %v695
  %vm703 = vmor %vm701, %vm702
  %v704 = vsel %vm703, %v695, %v700
  %v705 = vrsqrt.pop %v634
  %v706 = vmul.f32 %v705, %v634
  %v707 = vmul.f32 %v706, %v705
  %v708 = vmul.f32 0.5, %v707
  %v709 = vsub.f32 1.5, %v708
  %v710 = vmul.f32 %v705, %v709
  %vm711 = vweird.f32 %v634
  %vm712 = vweird.f32 %v705
  %vm713 = vmor %vm711, %vm712
  %v714 = vsel %vm713, %v705, %v710
  %v715 = vmul.f32 %v619, %v644
  %v716 = vmul.f32 %v620, %v654
  %v717 = vmul.f32 %v621, %v664
  %v718 = vmul.f32 %v622, %v674
  %v719 = vmul.f32 %v623, %v684
  %v720 = vmul.f32 %v624, %v694
  %v721 = vmul.f32 %v625, %v704
  %v722 = vmul.f32 %v626, %v714
  %724 = vset.pattern.permute.xlu0 0
  %725 = vperm.xlu0 %724, %v715
  %v726 = vpop.permute.xlu0 %725
  %729 = vset.pattern.permute.xlu0 0
  %730 = vperm.xlu0 %729, %v716
  %v731 = vpop.permute.xlu0 %730
  %734 = vset.pattern.permute.xlu0 0
  %735 = vperm.xlu0 %734, %v717
  %v736 = vpop.permute.xlu0 %735
  %739 = vset.pattern.permute.xlu0 0
  %740 = vperm.xlu0 %739, %v718
  %v741 = vpop.permute.xlu0 %740
  %744 = vset.pattern.permute.xlu0 0
  %745 = vperm.xlu0 %744, %v719
  %v746 = vpop.permute.xlu0 %745
  %749 = vset.pattern.permute.xlu0 0
  %750 = vperm.xlu0 %749, %v720
  %v751 = vpop.permute.xlu0 %750
  %754 = vset.pattern.permute.xlu0 0
  %755 = vperm.xlu0 %754, %v721
  %v756 = vpop.permute.xlu0 %755
  %759 = vset.pattern.permute.xlu0 0
  %760 = vperm.xlu0 %759, %v722
  %v761 = vpop.permute.xlu0 %760
  %v763 = vmul.f32 %v571, %v726
  %v764 = vmul.f32 %v572, %v731
  %v765 = vmul.f32 %v573, %v736
  %v766 = vmul.f32 %v574, %v741
  %v767 = vmul.f32 %v575, %v746
  %v768 = vmul.f32 %v576, %v751
  %v769 = vmul.f32 %v577, %v756
  %v770 = vmul.f32 %v578, %v761
  %v771 = vld [vmem:[%s4] sm:$0xff]
  %v772 = vld [vmem:[%s4 + $0x8] sm:$0xff]
  %v773 = vld [vmem:[%s4 + $0x10] sm:$0xff]
  %v774 = vld [vmem:[%s4 + $0x18] sm:$0xff]
  %v775 = vld [vmem:[%s4 + $0x20] sm:$0xff]
  %v776 = vld [vmem:[%s4 + $0x28] sm:$0xff]
  %v777 = vld [vmem:[%s4 + $0x30] sm:$0xff]
  %v778 = vld [vmem:[%s4 + $0x38] sm:$0xff]
  %780 = vset.pattern.permute.xlu0 0
  %781 = vperm.xlu0 %780, %v771
  %v782 = vpop.permute.xlu0 %781
  %785 = vset.pattern.permute.xlu0 0
  %786 = vperm.xlu0 %785, %v772
  %v787 = vpop.permute.xlu0 %786
  %790 = vset.pattern.permute.xlu0 0
  %791 = vperm.xlu0 %790, %v773
  %v792 = vpop.permute.xlu0 %791
  %795 = vset.pattern.permute.xlu0 0
  %796 = vperm.xlu0 %795, %v774
  %v797 = vpop.permute.xlu0 %796
  %800 = vset.pattern.permute.xlu0 0
  %801 = vperm.xlu0 %800, %v775
  %v802 = vpop.permute.xlu0 %801
  %805 = vset.pattern.permute.xlu0 0
  %806 = vperm.xlu0 %805, %v776
  %v807 = vpop.permute.xlu0 %806
  %810 = vset.pattern.permute.xlu0 0
  %811 = vperm.xlu0 %810, %v777
  %v812 = vpop.permute.xlu0 %811
  %815 = vset.pattern.permute.xlu0 0
  %816 = vperm.xlu0 %815, %v778
  %v817 = vpop.permute.xlu0 %816
  %v819 = vadd.f32 %v763, %v782
  %v820 = vadd.f32 %v764, %v787
  %v821 = vadd.f32 %v765, %v792
  %v822 = vadd.f32 %v766, %v797
  %v823 = vadd.f32 %v767, %v802
  %v824 = vadd.f32 %v768, %v807
  %v825 = vadd.f32 %v769, %v812
  %v826 = vadd.f32 %v770, %v817
  %vm827 = vcmp.ge.f32.partialorder %v819, 0.0
  %vm828 = vcmp.ge.f32.partialorder %v820, 0.0
  %vm829 = vcmp.ge.f32.partialorder %v821, 0.0
  %vm830 = vcmp.ge.f32.partialorder %v822, 0.0
  %vm831 = vcmp.ge.f32.partialorder %v823, 0.0
  %vm832 = vcmp.ge.f32.partialorder %v824, 0.0
  %vm833 = vcmp.ge.f32.partialorder %v825, 0.0
  %vm834 = vcmp.ge.f32.partialorder %v826, 0.0
  %v835 = vmul.f32 %v819, 0.2
  %v836 = vmul.f32 %v820, 0.2
  %v837 = vmul.f32 %v821, 0.2
  %v838 = vmul.f32 %v822, 0.2
  %v839 = vmul.f32 %v823, 0.2
  %v840 = vmul.f32 %v824, 0.2
  %v841 = vmul.f32 %v825, 0.2
  %v842 = vmul.f32 %v826, 0.2
  %v843 = vsel %vm827, %v819, %v835
  %v844 = vsel %vm828, %v820, %v836
  %v845 = vsel %vm829, %v821, %v837
  %v846 = vsel %vm830, %v822, %v838
  %v847 = vsel %vm831, %v823, %v839
  %v848 = vsel %vm832, %v824, %v840
  %v849 = vsel %vm833, %v825, %v841
  %v850 = vsel %vm834, %v826, %v842
  %851 = vst [vmem:[%s5] sm:$0xff] %v843
  %852 = vst [vmem:[%s5 + $0x8] sm:$0xff] %v844
  %853 = vst [vmem:[%s5 + $0x10] sm:$0xff] %v845
  %854 = vst [vmem:[%s5 + $0x18] sm:$0xff] %v846
  %855 = vst [vmem:[%s5 + $0x20] sm:$0xff] %v847
  %856 = vst [vmem:[%s5 + $0x28] sm:$0xff] %v848
  %857 = vst [vmem:[%s5 + $0x30] sm:$0xff] %v849
  %858 = vst [vmem:[%s5 + $0x38] sm:$0xff] %v850
  // Predicated region
  $region22: #{forward.8} parent=0 // pred_check
    _
  $region23: #{forward.8} parent=0 // pred_check_branch
    %860 = sbr.rel (0) target = $region25
  $region24: #{forward.8} parent=0 // pred_region
    _
  $region25: #{forward.8} parent=0 // pred_fallthru
    _
  // Predicated region
  $region26: #{forward.8} parent=0 // pred_check
    _
  $region27: #{forward.8} parent=0 // pred_check_branch
    %862 = sbr.rel (0) target = $region29
  $region28: #{forward.8} parent=0 // pred_region
    _
  $region29: #{forward.8} parent=0 // pred_fallthru
    _

// kernel: forward.9
$region0: #{forward.9}
  #allocation0 [shape = 'u32[]', space=smem, size = 0x4, offset = 0x4, fixed_abs, tag = 'smem constant byte address 0x4 - core index']
  #allocation1 [shape = 'u32[72,128]{1,0:T(1,128)}', space=vmem, size = 0x9000, scoped, tag = 'internal scratch']
  #allocation2 [shape = 'f32[1,1]{1,0:T(1,128)S(1)}', space=vmem, size = 0x200, scoped, tag = 'scoped memory for forward.9']
  %s0 = inlined_call_operand.vmem [shape: bf16[1024,128], index: 0, kind: input, shape index: {}]
  %s1 = inlined_call_operand.vmem [shape: bf16[1,1024], index: 1, kind: input, shape index: {}]
  %s2 = inlined_call_operand.<no memory space> [shape: f32[1,1], index: 2, kind: input, shape index: {}]
  %s3 = inlined_call_operand.vmem [shape: f32[1,128], index: 3, kind: output, shape index: {}]
  %s4 = sld [smem:[#allocation0]]
  $region22: #{forward.9} parent=0
    _
  %s6 = ssub.s32 1, %s4
  %s7 = scalar_select 0, %s6, %s4
  %v8 = vstv %s2
  %9 = vst [vmem:[#allocation2] sm:$0x1] %v8
  // Predicated region
  $region2: #{forward.9} parent=0 // pred_check
    _
  $region3: #{forward.9} parent=0 // pred_check_branch
    %11 = sbr.rel (0) target = $region5
  $region4: #{forward.9} parent=0 // pred_region
    _
  $region5: #{forward.9} parent=0 // pred_fallthru
    _
  // Predicated region
  $region6: #{forward.9} parent=0 // pred_check
    _
  $region7: #{forward.9} parent=0 // pred_check_branch
    %13 = sbr.rel (0) target = $region9
  $region8: #{forward.9} parent=0 // pred_region
    _
  $region9: #{forward.9} parent=0 // pred_fallthru
    _
  // Predicated region
  $region10: #{forward.9} parent=0 // pred_check
    _
  $region11: #{forward.9} parent=0 // pred_check_branch
    %15 = sbr.rel (0) target = $region13
  $region12: #{forward.9} parent=0 // pred_region
    _
  $region13: #{forward.9} parent=0 // pred_fallthru
    _
  %v16 = vld [vmem:[%s1] sm:$0xff]
  %v17 = vld [vmem:[%s0] sm:$0xf]
  %v18 = vld [vmem:[%s0 + $0x4] sm:$0xf]
  %v19 = vld [vmem:[%s0 + $0x8] sm:$0xf]
  %v20 = vld [vmem:[%s0 + $0xc] sm:$0xf]
  %v21 = vld [vmem:[%s0 + $0x10] sm:$0xf]
  %v22 = vld [vmem:[%s0 + $0x14] sm:$0xf]
  %v23 = vld [vmem:[%s0 + $0x18] sm:$0xf]
  %v24 = vld [vmem:[%s0 + $0x1c] sm:$0xf]
  %v25 = vld [vmem:[%s0 + $0x20] sm:$0xf]
  %v26 = vld [vmem:[%s0 + $0x24] sm:$0xf]
  %v27 = vld [vmem:[%s0 + $0x28] sm:$0xf]
  %v28 = vld [vmem:[%s0 + $0x2c] sm:$0xf]
  %v29 = vld [vmem:[%s0 + $0x30] sm:$0xf]
  %v30 = vld [vmem:[%s0 + $0x34] sm:$0xf]
  %v31 = vld [vmem:[%s0 + $0x38] sm:$0xf]
  %v32 = vld [vmem:[%s0 + $0x3c] sm:$0xf]
  %v33 = vld [vmem:[%s0 + $0x40] sm:$0xf]
  %v34 = vld [vmem:[%s0 + $0x44] sm:$0xf]
  %v35 = vld [vmem:[%s0 + $0x48] sm:$0xf]
  %v36 = vld [vmem:[%s0 + $0x4c] sm:$0xf]
  %v37 = vld [vmem:[%s0 + $0x50] sm:$0xf]
  %v38 = vld [vmem:[%s0 + $0x54] sm:$0xf]
  %v39 = vld [vmem:[%s0 + $0x58] sm:$0xf]
  %v40 = vld [vmem:[%s0 + $0x5c] sm:$0xf]
  %v41 = vld [vmem:[%s0 + $0x60] sm:$0xf]
  %v42 = vld [vmem:[%s0 + $0x64] sm:$0xf]
  %v43 = vld [vmem:[%s0 + $0x68] sm:$0xf]
  %v44 = vld [vmem:[%s0 + $0x6c] sm:$0xf]
  %v45 = vld [vmem:[%s0 + $0x70] sm:$0xf]
  %v46 = vld [vmem:[%s0 + $0x74] sm:$0xf]
  %v47 = vld [vmem:[%s0 + $0x78] sm:$0xf]
  %v48 = vld [vmem:[%s0 + $0x7c] sm:$0xf]
  %v49 = vld [vmem:[%s0 + $0x80] sm:$0xf]
  %v50 = vld [vmem:[%s0 + $0x84] sm:$0xf]
  %v51 = vld [vmem:[%s0 + $0x88] sm:$0xf]
  %v52 = vld [vmem:[%s0 + $0x8c] sm:$0xf]
  %v53 = vld [vmem:[%s0 + $0x90] sm:$0xf]
  %v54 = vld [vmem:[%s0 + $0x94] sm:$0xf]
  %v55 = vld [vmem:[%s0 + $0x98] sm:$0xf]
  %v56 = vld [vmem:[%s0 + $0x9c] sm:$0xf]
  %v57 = vld [vmem:[%s0 + $0xa0] sm:$0xf]
  %v58 = vld [vmem:[%s0 + $0xa4] sm:$0xf]
  %v59 = vld [vmem:[%s0 + $0xa8] sm:$0xf]
  %v60 = vld [vmem:[%s0 + $0xac] sm:$0xf]
  %v61 = vld [vmem:[%s0 + $0xb0] sm:$0xf]
  %v62 = vld [vmem:[%s0 + $0xb4] sm:$0xf]
  %v63 = vld [vmem:[%s0 + $0xb8] sm:$0xf]
  %v64 = vld [vmem:[%s0 + $0xbc] sm:$0xf]
  %v65 = vld [vmem:[%s0 + $0xc0] sm:$0xf]
  %v66 = vld [vmem:[%s0 + $0xc4] sm:$0xf]
  %v67 = vld [vmem:[%s0 + $0xc8] sm:$0xf]
  %v68 = vld [vmem:[%s0 + $0xcc] sm:$0xf]
  %v69 = vld [vmem:[%s0 + $0xd0] sm:$0xf]
  %v70 = vld [vmem:[%s0 + $0xd4] sm:$0xf]
  %v71 = vld [vmem:[%s0 + $0xd8] sm:$0xf]
  %v72 = vld [vmem:[%s0 + $0xdc] sm:$0xf]
  %v73 = vld [vmem:[%s0 + $0xe0] sm:$0xf]
  %v74 = vld [vmem:[%s0 + $0xe4] sm:$0xf]
  %v75 = vld [vmem:[%s0 + $0xe8] sm:$0xf]
  %v76 = vld [vmem:[%s0 + $0xec] sm:$0xf]
  %v77 = vld [vmem:[%s0 + $0xf0] sm:$0xf]
  %v78 = vld [vmem:[%s0 + $0xf4] sm:$0xf]
  %v79 = vld [vmem:[%s0 + $0xf8] sm:$0xf]
  %v80 = vld [vmem:[%s0 + $0xfc] sm:$0xf]
  %v81 = vld [vmem:[%s0 + $0x100] sm:$0xf]
  %v82 = vld [vmem:[%s0 + $0x104] sm:$0xf]
  %v83 = vld [vmem:[%s0 + $0x108] sm:$0xf]
  %v84 = vld [vmem:[%s0 + $0x10c] sm:$0xf]
  %v85 = vld [vmem:[%s0 + $0x110] sm:$0xf]
  %v86 = vld [vmem:[%s0 + $0x114] sm:$0xf]
  %v87 = vld [vmem:[%s0 + $0x118] sm:$0xf]
  %v88 = vld [vmem:[%s0 + $0x11c] sm:$0xf]
  %v89 = vld [vmem:[%s0 + $0x120] sm:$0xf]
  %v90 = vld [vmem:[%s0 + $0x124] sm:$0xf]
  %v91 = vld [vmem:[%s0 + $0x128] sm:$0xf]
  %v92 = vld [vmem:[%s0 + $0x12c] sm:$0xf]
  %v93 = vld [vmem:[%s0 + $0x130] sm:$0xf]
  %v94 = vld [vmem:[%s0 + $0x134] sm:$0xf]
  %v95 = vld [vmem:[%s0 + $0x138] sm:$0xf]
  %v96 = vld [vmem:[%s0 + $0x13c] sm:$0xf]
  %v97 = vld [vmem:[%s0 + $0x140] sm:$0xf]
  %v98 = vld [vmem:[%s0 + $0x144] sm:$0xf]
  %v99 = vld [vmem:[%s0 + $0x148] sm:$0xf]
  %v100 = vld [vmem:[%s0 + $0x14c] sm:$0xf]
  %v101 = vld [vmem:[%s0 + $0x150] sm:$0xf]
  %v102 = vld [vmem:[%s0 + $0x154] sm:$0xf]
  %v103 = vld [vmem:[%s0 + $0x158] sm:$0xf]
  %v104 = vld [vmem:[%s0 + $0x15c] sm:$0xf]
  %v105 = vld [vmem:[%s0 + $0x160] sm:$0xf]
  %v106 = vld [vmem:[%s0 + $0x164] sm:$0xf]
  %v107 = vld [vmem:[%s0 + $0x168] sm:$0xf]
  %v108 = vld [vmem:[%s0 + $0x16c] sm:$0xf]
  %v109 = vld [vmem:[%s0 + $0x170] sm:$0xf]
  %v110 = vld [vmem:[%s0 + $0x174] sm:$0xf]
  %v111 = vld [vmem:[%s0 + $0x178] sm:$0xf]
  %v112 = vld [vmem:[%s0 + $0x17c] sm:$0xf]
  %v113 = vld [vmem:[%s0 + $0x180] sm:$0xf]
  %v114 = vld [vmem:[%s0 + $0x184] sm:$0xf]
  %v115 = vld [vmem:[%s0 + $0x188] sm:$0xf]
  %v116 = vld [vmem:[%s0 + $0x18c] sm:$0xf]
  %v117 = vld [vmem:[%s0 + $0x190] sm:$0xf]
  %v118 = vld [vmem:[%s0 + $0x194] sm:$0xf]
  %v119 = vld [vmem:[%s0 + $0x198] sm:$0xf]
  %v120 = vld [vmem:[%s0 + $0x19c] sm:$0xf]
  %v121 = vld [vmem:[%s0 + $0x1a0] sm:$0xf]
  %v122 = vld [vmem:[%s0 + $0x1a4] sm:$0xf]
  %v123 = vld [vmem:[%s0 + $0x1a8] sm:$0xf]
  %v124 = vld [vmem:[%s0 + $0x1ac] sm:$0xf]
  %v125 = vld [vmem:[%s0 + $0x1b0] sm:$0xf]
  %v126 = vld [vmem:[%s0 + $0x1b4] sm:$0xf]
  %v127 = vld [vmem:[%s0 + $0x1b8] sm:$0xf]
  %v128 = vld [vmem:[%s0 + $0x1bc] sm:$0xf]
  %v129 = vld [vmem:[%s0 + $0x1c0] sm:$0xf]
  %v130 = vld [vmem:[%s0 + $0x1c4] sm:$0xf]
  %v131 = vld [vmem:[%s0 + $0x1c8] sm:$0xf]
  %v132 = vld [vmem:[%s0 + $0x1cc] sm:$0xf]
  %v133 = vld [vmem:[%s0 + $0x1d0] sm:$0xf]
  %v134 = vld [vmem:[%s0 + $0x1d4] sm:$0xf]
  %v135 = vld [vmem:[%s0 + $0x1d8] sm:$0xf]
  %v136 = vld [vmem:[%s0 + $0x1dc] sm:$0xf]
  %v137 = vld [vmem:[%s0 + $0x1e0] sm:$0xf]
  %v138 = vld [vmem:[%s0 + $0x1e4] sm:$0xf]
  %v139 = vld [vmem:[%s0 + $0x1e8] sm:$0xf]
  %v140 = vld [vmem:[%s0 + $0x1ec] sm:$0xf]
  %v141 = vld [vmem:[%s0 + $0x1f0] sm:$0xf]
  %v142 = vld [vmem:[%s0 + $0x1f4] sm:$0xf]
  %v143 = vld [vmem:[%s0 + $0x1f8] sm:$0xf]
  %v144 = vld [vmem:[%s0 + $0x1fc] sm:$0xf]
  %v145 = vld [vmem:[#allocation2] sm:$0x1]
  %147 = vset.pattern.permute.xlu0 0
  %148 = vperm.xlu0 %147, %v145
  %v149 = vpop.permute.xlu0 %148
  %v151 = vperm.slane %v149, 0
  %153 = vst [vmem:[#allocation1] ss:$9 sm:$0xff] %v16
  %v154 = vld [vmem:[#allocation1] sm:$0xff]
  %v155 = vld [vmem:[#allocation1 + $0x9] sm:$0xff]
  %v156 = vld [vmem:[#allocation1 + $0x12] sm:$0xff]
  %v157 = vld [vmem:[#allocation1 + $0x1b] sm:$0xff]
  %v158 = vld [vmem:[#allocation1 + $0x24] sm:$0xff]
  %v159 = vld [vmem:[#allocation1 + $0x2d] sm:$0xff]
  %v160 = vld [vmem:[#allocation1 + $0x36] sm:$0xff]
  %v161 = vld [vmem:[#allocation1 + $0x3f] sm:$0xff]
  %v298 = vunpack.c.l.b16 %v17
  %v299 = vunpack.c.l.b16 %v18
  %v300 = vunpack.c.l.b16 %v19
  %v301 = vunpack.c.l.b16 %v20
  %v302 = vunpack.c.l.b16 %v21
  %v303 = vunpack.c.l.b16 %v22
  %v304 = vunpack.c.l.b16 %v23
  %v305 = vunpack.c.l.b16 %v24
  %v306 = vunpack.c.l.b16 %v25
  %v307 = vunpack.c.l.b16 %v26
  %v308 = vunpack.c.l.b16 %v27
  %v309 = vunpack.c.l.b16 %v28
  %v310 = vunpack.c.l.b16 %v29
  %v311 = vunpack.c.l.b16 %v30
  %v312 = vunpack.c.l.b16 %v31
  %v313 = vunpack.c.l.b16 %v32
  %v314 = vunpack.c.l.b16 %v33
  %v315 = vunpack.c.l.b16 %v34
  %v316 = vunpack.c.l.b16 %v35
  %v317 = vunpack.c.l.b16 %v36
  %v318 = vunpack.c.l.b16 %v37
  %v319 = vunpack.c.l.b16 %v38
  %v320 = vunpack.c.l.b16 %v39
  %v321 = vunpack.c.l.b16 %v40
  %v322 = vunpack.c.l.b16 %v41
  %v323 = vunpack.c.l.b16 %v42
  %v324 = vunpack.c.l.b16 %v43
  %v325 = vunpack.c.l.b16 %v44
  %v326 = vunpack.c.l.b16 %v45
  %v327 = vunpack.c.l.b16 %v46
  %v328 = vunpack.c.l.b16 %v47
  %v329 = vunpack.c.l.b16 %v48
  %v330 = vunpack.c.l.b16 %v49
  %v331 = vunpack.c.l.b16 %v50
  %v332 = vunpack.c.l.b16 %v51
  %v333 = vunpack.c.l.b16 %v52
  %v334 = vunpack.c.l.b16 %v53
  %v335 = vunpack.c.l.b16 %v54
  %v336 = vunpack.c.l.b16 %v55
  %v337 = vunpack.c.l.b16 %v56
  %v338 = vunpack.c.l.b16 %v57
  %v339 = vunpack.c.l.b16 %v58
  %v340 = vunpack.c.l.b16 %v59
  %v341 = vunpack.c.l.b16 %v60
  %v342 = vunpack.c.l.b16 %v61
  %v343 = vunpack.c.l.b16 %v62
  %v344 = vunpack.c.l.b16 %v63
  %v345 = vunpack.c.l.b16 %v64
  %v346 = vunpack.c.l.b16 %v65
  %v347 = vunpack.c.l.b16 %v66
  %v348 = vunpack.c.l.b16 %v67
  %v349 = vunpack.c.l.b16 %v68
  %v350 = vunpack.c.l.b16 %v69
  %v351 = vunpack.c.l.b16 %v70
  %v352 = vunpack.c.l.b16 %v71
  %v353 = vunpack.c.l.b16 %v72
  %v354 = vunpack.c.l.b16 %v73
  %v355 = vunpack.c.l.b16 %v74
  %v356 = vunpack.c.l.b16 %v75
  %v357 = vunpack.c.l.b16 %v76
  %v358 = vunpack.c.l.b16 %v77
  %v359 = vunpack.c.l.b16 %v78
  %v360 = vunpack.c.l.b16 %v79
  %v361 = vunpack.c.l.b16 %v80
  %v362 = vunpack.c.l.b16 %v81
  %v363 = vunpack.c.l.b16 %v82
  %v364 = vunpack.c.l.b16 %v83
  %v365 = vunpack.c.l.b16 %v84
  %v366 = vunpack.c.l.b16 %v85
  %v367 = vunpack.c.l.b16 %v86
  %v368 = vunpack.c.l.b16 %v87
  %v369 = vunpack.c.l.b16 %v88
  %v370 = vunpack.c.l.b16 %v89
  %v371 = vunpack.c.l.b16 %v90
  %v372 = vunpack.c.l.b16 %v91
  %v373 = vunpack.c.l.b16 %v92
  %v374 = vunpack.c.l.b16 %v93
  %v375 = vunpack.c.l.b16 %v94
  %v376 = vunpack.c.l.b16 %v95
  %v377 = vunpack.c.l.b16 %v96
  %v378 = vunpack.c.l.b16 %v97
  %v379 = vunpack.c.l.b16 %v98
  %v380 = vunpack.c.l.b16 %v99
  %v381 = vunpack.c.l.b16 %v100
  %v382 = vunpack.c.l.b16 %v101
  %v383 = vunpack.c.l.b16 %v102
  %v384 = vunpack.c.l.b16 %v103
  %v385 = vunpack.c.l.b16 %v104
  %v386 = vunpack.c.l.b16 %v105
  %v387 = vunpack.c.l.b16 %v106
  %v388 = vunpack.c.l.b16 %v107
  %v389 = vunpack.c.l.b16 %v108
  %v390 = vunpack.c.l.b16 %v109
  %v391 = vunpack.c.l.b16 %v110
  %v392 = vunpack.c.l.b16 %v111
  %v393 = vunpack.c.l.b16 %v112
  %v394 = vunpack.c.l.b16 %v113
  %v395 = vunpack.c.l.b16 %v114
  %v396 = vunpack.c.l.b16 %v115
  %v397 = vunpack.c.l.b16 %v116
  %v398 = vunpack.c.l.b16 %v117
  %v399 = vunpack.c.l.b16 %v118
  %v400 = vunpack.c.l.b16 %v119
  %v401 = vunpack.c.l.b16 %v120
  %v402 = vunpack.c.l.b16 %v121
  %v403 = vunpack.c.l.b16 %v122
  %v404 = vunpack.c.l.b16 %v123
  %v405 = vunpack.c.l.b16 %v124
  %v406 = vunpack.c.l.b16 %v125
  %v407 = vunpack.c.l.b16 %v126
  %v408 = vunpack.c.l.b16 %v127
  %v409 = vunpack.c.l.b16 %v128
  %v410 = vunpack.c.l.b16 %v129
  %v411 = vunpack.c.l.b16 %v130
  %v412 = vunpack.c.l.b16 %v131
  %v413 = vunpack.c.l.b16 %v132
  %v414 = vunpack.c.l.b16 %v133
  %v415 = vunpack.c.l.b16 %v134
  %v416 = vunpack.c.l.b16 %v135
  %v417 = vunpack.c.l.b16 %v136
  %v418 = vunpack.c.l.b16 %v137
  %v419 = vunpack.c.l.b16 %v138
  %v420 = vunpack.c.l.b16 %v139
  %v421 = vunpack.c.l.b16 %v140
  %v422 = vunpack.c.l.b16 %v141
  %v423 = vunpack.c.l.b16 %v142
  %v424 = vunpack.c.l.b16 %v143
  %v425 = vunpack.c.l.b16 %v144
  %v426 = vpack.c.b16 %v299, %v298
  %v427 = vpack.c.b16 %v301, %v300
  %v428 = vpack.c.b16 %v303, %v302
  %v429 = vpack.c.b16 %v305, %v304
  %v430 = vpack.c.b16 %v307, %v306
  %v431 = vpack.c.b16 %v309, %v308
  %v432 = vpack.c.b16 %v311, %v310
  %v433 = vpack.c.b16 %v313, %v312
  %v434 = vpack.c.b16 %v315, %v314
  %v435 = vpack.c.b16 %v317, %v316
  %v436 = vpack.c.b16 %v319, %v318
  %v437 = vpack.c.b16 %v321, %v320
  %v438 = vpack.c.b16 %v323, %v322
  %v439 = vpack.c.b16 %v325, %v324
  %v440 = vpack.c.b16 %v327, %v326
  %v441 = vpack.c.b16 %v329, %v328
  %v442 = vpack.c.b16 %v331, %v330
  %v443 = vpack.c.b16 %v333, %v332
  %v444 = vpack.c.b16 %v335, %v334
  %v445 = vpack.c.b16 %v337, %v336
  %v446 = vpack.c.b16 %v339, %v338
  %v447 = vpack.c.b16 %v341, %v340
  %v448 = vpack.c.b16 %v343, %v342
  %v449 = vpack.c.b16 %v345, %v344
  %v450 = vpack.c.b16 %v347, %v346
  %v451 = vpack.c.b16 %v349, %v348
  %v452 = vpack.c.b16 %v351, %v350
  %v453 = vpack.c.b16 %v353, %v352
  %v454 = vpack.c.b16 %v355, %v354
  %v455 = vpack.c.b16 %v357, %v356
  %v456 = vpack.c.b16 %v359, %v358
  %v457 = vpack.c.b16 %v361, %v360
  %v458 = vpack.c.b16 %v363, %v362
  %v459 = vpack.c.b16 %v365, %v364
  %v460 = vpack.c.b16 %v367, %v366
  %v461 = vpack.c.b16 %v369, %v368
  %v462 = vpack.c.b16 %v371, %v370
  %v463 = vpack.c.b16 %v373, %v372
  %v464 = vpack.c.b16 %v375, %v374
  %v465 = vpack.c.b16 %v377, %v376
  %v466 = vpack.c.b16 %v379, %v378
  %v467 = vpack.c.b16 %v381, %v380
  %v468 = vpack.c.b16 %v383, %v382
  %v469 = vpack.c.b16 %v385, %v384
  %v470 = vpack.c.b16 %v387, %v386
  %v471 = vpack.c.b16 %v389, %v388
  %v472 = vpack.c.b16 %v391, %v390
  %v473 = vpack.c.b16 %v393, %v392
  %v474 = vpack.c.b16 %v395, %v394
  %v475 = vpack.c.b16 %v397, %v396
  %v476 = vpack.c.b16 %v399, %v398
  %v477 = vpack.c.b16 %v401, %v400
  %v478 = vpack.c.b16 %v403, %v402
  %v479 = vpack.c.b16 %v405, %v404
  %v480 = vpack.c.b16 %v407, %v406
  %v481 = vpack.c.b16 %v409, %v408
  %v482 = vpack.c.b16 %v411, %v410
  %v483 = vpack.c.b16 %v413, %v412
  %v484 = vpack.c.b16 %v415, %v414
  %v485 = vpack.c.b16 %v417, %v416
  %v486 = vpack.c.b16 %v419, %v418
  %v487 = vpack.c.b16 %v421, %v420
  %v488 = vpack.c.b16 %v423, %v422
  %v489 = vpack.c.b16 %v425, %v424
  %554 = vmatpush.bf16.msra.mxu0 %v433
  %555 = vmatpush.bf16.msra.mxu0 %v432
  %556 = vmatpush.bf16.msra.mxu0 %v431
  %557 = vmatpush.bf16.msra.mxu0 %v430
  %558 = vmatpush.bf16.msra.mxu0 %v429
  %559 = vmatpush.bf16.msra.mxu0 %v428
  %560 = vmatpush.bf16.msra.mxu0 %v427
  %561 = vmatpush.bf16.msra.mxu0 %v426
  %562 = vmatmul.bf16.gmra.mxu0 %v154
  %v563 = vpop.f32.mrf.mxu0
  %v564 = vadd.f32 %v151, %v563
  %v565 = vpop.f32.mrf.mxu0
  %566 = vdwg.mxu0
  %567 = vmatpush.bf16.msra.mxu0 %v441
  %568 = vmatpush.bf16.msra.mxu0 %v440
  %569 = vmatpush.bf16.msra.mxu0 %v439
  %570 = vmatpush.bf16.msra.mxu0 %v438
  %571 = vmatpush.bf16.msra.mxu0 %v437
  %572 = vmatpush.bf16.msra.mxu0 %v436
  %573 = vmatpush.bf16.msra.mxu0 %v435
  %574 = vmatpush.bf16.msra.mxu0 %v434
  %575 = vmatmul.bf16.gmra.mxu0 %v155
  %v576 = vpop.f32.mrf.mxu0
  %v577 = vadd.f32 %v564, %v576
  %v578 = vpop.f32.mrf.mxu0
  %579 = vdwg.mxu0
  %580 = vmatpush.bf16.msra.mxu0 %v449
  %581 = vmatpush.bf16.msra.mxu0 %v448
  %582 = vmatpush.bf16.msra.mxu0 %v447
  %583 = vmatpush.bf16.msra.mxu0 %v446
  %584 = vmatpush.bf16.msra.mxu0 %v445
  %585 = vmatpush.bf16.msra.mxu0 %v444
  %586 = vmatpush.bf16.msra.mxu0 %v443
  %587 = vmatpush.bf16.msra.mxu0 %v442
  %588 = vmatmul.bf16.gmra.mxu0 %v156
  %v589 = vpop.f32.mrf.mxu0
  %v590 = vadd.f32 %v577, %v589
  %v591 = vpop.f32.mrf.mxu0
  %592 = vdwg.mxu0
  %593 = vmatpush.bf16.msra.mxu0 %v457
  %594 = vmatpush.bf16.msra.mxu0 %v456
  %595 = vmatpush.bf16.msra.mxu0 %v455
  %596 = vmatpush.bf16.msra.mxu0 %v454
  %597 = vmatpush.bf16.msra.mxu0 %v453
  %598 = vmatpush.bf16.msra.mxu0 %v452
  %599 = vmatpush.bf16.msra.mxu0 %v451
  %600 = vmatpush.bf16.msra.mxu0 %v450
  %601 = vmatmul.bf16.gmra.mxu0 %v157
  %v602 = vpop.f32.mrf.mxu0
  %v603 = vadd.f32 %v590, %v602
  %v604 = vpop.f32.mrf.mxu0
  %605 = vdwg.mxu0
  %606 = vmatpush.bf16.msra.mxu0 %v465
  %607 = vmatpush.bf16.msra.mxu0 %v464
  %608 = vmatpush.bf16.msra.mxu0 %v463
  %609 = vmatpush.bf16.msra.mxu0 %v462
  %610 = vmatpush.bf16.msra.mxu0 %v461
  %611 = vmatpush.bf16.msra.mxu0 %v460
  %612 = vmatpush.bf16.msra.mxu0 %v459
  %613 = vmatpush.bf16.msra.mxu0 %v458
  %614 = vmatmul.bf16.gmra.mxu0 %v158
  %v615 = vpop.f32.mrf.mxu0
  %v616 = vadd.f32 %v603, %v615
  %v617 = vpop.f32.mrf.mxu0
  %618 = vdwg.mxu0
  %619 = vmatpush.bf16.msra.mxu0 %v473
  %620 = vmatpush.bf16.msra.mxu0 %v472
  %621 = vmatpush.bf16.msra.mxu0 %v471
  %622 = vmatpush.bf16.msra.mxu0 %v470
  %623 = vmatpush.bf16.msra.mxu0 %v469
  %624 = vmatpush.bf16.msra.mxu0 %v468
  %625 = vmatpush.bf16.msra.mxu0 %v467
  %626 = vmatpush.bf16.msra.mxu0 %v466
  %627 = vmatmul.bf16.gmra.mxu0 %v159
  %v628 = vpop.f32.mrf.mxu0
  %v629 = vadd.f32 %v616, %v628
  %v630 = vpop.f32.mrf.mxu0
  %631 = vdwg.mxu0
  %632 = vmatpush.bf16.msra.mxu0 %v481
  %633 = vmatpush.bf16.msra.mxu0 %v480
  %634 = vmatpush.bf16.msra.mxu0 %v479
  %635 = vmatpush.bf16.msra.mxu0 %v478
  %636 = vmatpush.bf16.msra.mxu0 %v477
  %637 = vmatpush.bf16.msra.mxu0 %v476
  %638 = vmatpush.bf16.msra.mxu0 %v475
  %639 = vmatpush.bf16.msra.mxu0 %v474
  %640 = vmatmul.bf16.gmra.mxu0 %v160
  %v641 = vpop.f32.mrf.mxu0
  %v642 = vadd.f32 %v629, %v641
  %v643 = vpop.f32.mrf.mxu0
  %644 = vdwg.mxu0
  %645 = vmatpush.bf16.msra.mxu0 %v489
  %646 = vmatpush.bf16.msra.mxu0 %v488
  %647 = vmatpush.bf16.msra.mxu0 %v487
  %648 = vmatpush.bf16.msra.mxu0 %v486
  %649 = vmatpush.bf16.msra.mxu0 %v485
  %650 = vmatpush.bf16.msra.mxu0 %v484
  %651 = vmatpush.bf16.msra.mxu0 %v483
  %652 = vmatpush.bf16.msra.mxu0 %v482
  %653 = vmatmul.bf16.gmra.mxu0 %v161
  %v654 = vpop.f32.mrf.mxu0
  %v655 = vadd.f32 %v642, %v654
  %v656 = vpop.f32.mrf.mxu0
  %657 = vdwg.mxu0
  %658 = vst [vmem:[%s3] sm:$0x1] %v655
  // Predicated region
  $region14: #{forward.9} parent=0 // pred_check
    _
  $region15: #{forward.9} parent=0 // pred_check_branch
    %660 = sbr.rel (0) target = $region17
  $region16: #{forward.9} parent=0 // pred_region
    _
  $region17: #{forward.9} parent=0 // pred_fallthru
    _
  // Predicated region
  $region18: #{forward.9} parent=0 // pred_check
    _
  $region19: #{forward.9} parent=0 // pred_check_branch
    %662 = sbr.rel (0) target = $region21
  $region20: #{forward.9} parent=0 // pred_region
    _
  $region21: #{forward.9} parent=0 // pred_fallthru
    _

</llo_original>
